<compile_context>
chip_gen: v7x
topology: tpu7x:2x2x1
jax: 0.10.0
libtpu: 0.0.40
codegen_flags: <defaults>
</compile_context>

<pallas_src>
import functools

import jax
import jax.numpy as jnp
from jax import lax
from jax.experimental import pallas as pl
from jax.experimental.pallas import tpu as pltpu


# ------------------------- model hyper-parameters (small) -------------------
IN_CHANNELS = 8
OUT_CHANNELS = 4
HIDDEN_CHANNELS = 16
KERNEL_SIZE = 5
DILATION_RATE = 2
N_LAYERS = 3
BATCH = 2
T_LEN = 16


# ------------------------------ the kernel ----------------------------------
def _posterior_encoder_kernel(
    n_layers, dilation_rate, kernel_size, max_pad,
    # scalar-prefetch ref
    lens_ref,
    # inputs
    x_ref, noise_ref,
    pre_w_ref, pre_b_ref,
    in_w_ref, in_b_ref,
    rs_w_ref, rs_b_ref,
    rs_wl_ref, rs_bl_ref,
    proj_w_ref, proj_b_ref,
    # outputs
    out_ref,
    # scratch
    hp_ref,
):
    b = pl.program_id(0)
    length = lens_ref[b]

    T = x_ref.shape[0]
    H = pre_w_ref.shape[1]
    C_OUT = noise_ref.shape[1]
    K = kernel_size

    # sequence_mask(x_lengths, T) -> (T, 1) float mask for this batch element
    t_idx = lax.broadcasted_iota(jnp.int32, (T, 1), 0)
    mask = (t_idx < length).astype(jnp.float32)

    # ---- pre: 1x1 conv == matmul over channels, then mask --------------------
    h = (jnp.dot(x_ref[...].astype(jnp.bfloat16), pre_w_ref[...],
                 preferred_element_type=jnp.float32)
         + pre_b_ref[...]) * mask                                    # (T, H) f32

    # zero the padded scratch once; the halo rows stay zero for every layer
    hp_ref[...] = jnp.zeros_like(hp_ref)

    # ---- WN encoder (dilated gated convs, residual + skip) -------------------
    skip = None
    for i in range(n_layers):
        d = dilation_rate ** i
        pad = d * (kernel_size - 1) // 2

        # masked activation into the center of the padded scratch (static slice)
        hp_ref[max_pad:max_pad + T, :] = h

        # im2col: K shifted (T, H) windows at static sublane starts -> (T, K*H)
        start0 = max_pad - pad
        windows = [hp_ref[start0 + d * k: start0 + d * k + T, :]
                   for k in range(K)]
        x_cat = jnp.concatenate(windows, axis=-1).astype(jnp.bfloat16)

        # one dilated-conv matmul per layer, bias folded into the result
        x_in = (jnp.dot(x_cat, in_w_ref[i],
                        preferred_element_type=jnp.float32)
                + in_b_ref[i])                                       # (T, 2H)

        # fused_add_tanh_sigmoid_multiply (g = 0 since gin_channels == 0)
        acts = jnp.tanh(x_in[:, :H]) * jax.nn.sigmoid(x_in[:, H:])   # (T, H) f32
        acts_bf = acts.astype(jnp.bfloat16)

        if i < n_layers - 1:
            rs = (jnp.dot(acts_bf, rs_w_ref[i],
                          preferred_element_type=jnp.float32)
                  + rs_b_ref[i])                                     # (T, 2H)
            h = (h + rs[:, :H]) * mask
            skip_c = rs[:, H:]
        else:
            # last layer: res_skip conv has only H output channels (skip only)
            rs = (jnp.dot(acts_bf, rs_wl_ref[...],
                          preferred_element_type=jnp.float32)
                  + rs_bl_ref[...])                                  # (T, H)
            skip_c = rs
        skip = skip_c if skip is None else skip + skip_c

    out = skip * mask                                                # (T, H)

    # ---- proj: 1x1 conv, mask, split, reparameterize -------------------------
    stats = (jnp.dot(out.astype(jnp.bfloat16), proj_w_ref[...],
                     preferred_element_type=jnp.float32)
             + proj_b_ref[...]) * mask                               # (T, 2*C_out)
    m = stats[:, :C_OUT]
    logs = stats[:, C_OUT:]
    z = (m + noise_ref[...] * jnp.exp(logs)) * mask

    # single packed store per grid step: lanes are [z | m | logs]
    out_ref[...] = jnp.concatenate([z, stats], axis=-1)              # (T, 3*C_out)


# ------------------------------ wrapper --------------------------------------
def posterior_encoder_forward(x_nct, x_lengths, noise_nct, params):
    """x_nct: (B, Cin, T) f32, x_lengths: (B,) int32, noise_nct: (B, C_out, T).

    Returns (z, m, logs, x_mask) in PyTorch layout:
      z, m, logs: (B, C_out, T);  x_mask: (B, 1, T).
    """
    B, Cin, T = x_nct.shape
    H = params["pre_w"].shape[1]
    L, K = params["in_w"].shape[0], params["in_w"].shape[1]
    C_out = params["proj_w"].shape[1] // 2
    max_pad = DILATION_RATE ** (L - 1) * (K - 1) // 2

    x_btc = jnp.transpose(x_nct, (0, 2, 1))          # (B, T, Cin)
    noise_btc = jnp.transpose(noise_nct, (0, 2, 1))  # (B, T, C_out)

    # matmul operands in bf16 (MXU native datapath); biases / elementwise in f32
    pre_w = params["pre_w"].astype(jnp.bfloat16)
    in_w = params["in_w"].reshape(L, K * H, 2 * H).astype(jnp.bfloat16)
    rs_w = params["rs_w"].astype(jnp.bfloat16)
    rs_w_last = params["rs_w_last"].astype(jnp.bfloat16)
    proj_w = params["proj_w"].astype(jnp.bfloat16)

    kernel = functools.partial(
        _posterior_encoder_kernel, L, DILATION_RATE, K, max_pad)

    def whole(ndim):  # constant block index -> fetched once, resident in VMEM
        return lambda b, lens: (0,) * ndim

    grid_spec = pltpu.PrefetchScalarGridSpec(
        num_scalar_prefetch=1,
        grid=(B,),
        in_specs=[
            pl.BlockSpec((pl.Squeezed(), T, Cin), lambda b, lens: (b, 0, 0)),
            pl.BlockSpec((pl.Squeezed(), T, C_out), lambda b, lens: (b, 0, 0)),
            pl.BlockSpec(pre_w.shape, whole(2)),
            pl.BlockSpec(params["pre_b"].shape, whole(2)),
            pl.BlockSpec(in_w.shape, whole(3)),
            pl.BlockSpec(params["in_b"].shape, whole(3)),
            pl.BlockSpec(rs_w.shape, whole(3)),
            pl.BlockSpec(params["rs_b"].shape, whole(3)),
            pl.BlockSpec(rs_w_last.shape, whole(2)),
            pl.BlockSpec(params["rs_b_last"].shape, whole(2)),
            pl.BlockSpec(proj_w.shape, whole(2)),
            pl.BlockSpec(params["proj_b"].shape, whole(2)),
        ],
        out_specs=pl.BlockSpec((pl.Squeezed(), T, 3 * C_out),
                               lambda b, lens: (b, 0, 0)),
        scratch_shapes=[pltpu.VMEM((T + 2 * max_pad, H), jnp.float32)],
    )

    packed = pl.pallas_call(
        kernel,
        out_shape=jax.ShapeDtypeStruct((B, T, 3 * C_out), jnp.float32),
        grid_spec=grid_spec,
        compiler_params=pltpu.CompilerParams(
            dimension_semantics=("parallel",)),   # batch iterations independent
    )(
        x_lengths.astype(jnp.int32), x_btc, noise_btc,
        pre_w, params["pre_b"],
        in_w, params["in_b"],
        rs_w, params["rs_b"],
        rs_w_last, params["rs_b_last"],
        proj_w, params["proj_b"],
    )

    # unpack [z | m | logs] and go back to PyTorch (B, C, T) layout
    z = jnp.transpose(packed[..., :C_out], (0, 2, 1))
    m = jnp.transpose(packed[..., C_out:2 * C_out], (0, 2, 1))
    logs = jnp.transpose(packed[..., 2 * C_out:], (0, 2, 1))

    # sequence mask depends only on x_lengths -> compute in the wrapper
    x_mask = (jnp.arange(T)[None, :] < x_lengths[:, None]).astype(jnp.float32)
    x_mask = x_mask[:, None, :]                                      # (B, 1, T)
    return z, m, logs, x_mask


# ------------------------- deterministic parameter init ----------------------
def init_params(key):
    ks = jax.random.split(key, 10)
    H, Cin, Cout, K, L = (HIDDEN_CHANNELS, IN_CHANNELS, OUT_CHANNELS,
                          KERNEL_SIZE, N_LAYERS)
    s = 0.1
    return {
        # pre: Conv1d(Cin, H, 1) stored transposed (Cin, H)
        "pre_w": s * jax.random.normal(ks[0], (Cin, H), jnp.float32),
        "pre_b": s * jax.random.normal(ks[1], (1, H), jnp.float32),
        # WN in_layers: Conv1d(H, 2H, K, dilation=2**i) -> (L, K, H, 2H)
        "in_w": s * jax.random.normal(ks[2], (L, K, H, 2 * H), jnp.float32),
        "in_b": s * jax.random.normal(ks[3], (L, 1, 2 * H), jnp.float32),
        # WN res_skip layers 0..L-2: Conv1d(H, 2H, 1) -> (L-1, H, 2H)
        "rs_w": s * jax.random.normal(ks[4], (L - 1, H, 2 * H), jnp.float32),
        "rs_b": s * jax.random.normal(ks[5], (L - 1, 1, 2 * H), jnp.float32),
        # last res_skip layer: Conv1d(H, H, 1) (skip only) -> (H, H), matches PyTorch
        "rs_w_last": s * jax.random.normal(ks[6], (H, H), jnp.float32),
        "rs_b_last": s * jax.random.normal(ks[7], (1, H), jnp.float32),
        # proj: Conv1d(H, 2*Cout, 1) -> (H, 2*Cout)
        "proj_w": s * jax.random.normal(ks[8], (H, 2 * Cout), jnp.float32),
        "proj_b": s * jax.random.normal(ks[9], (1, 2 * Cout), jnp.float32),
    }


if __name__ == "__main__":
    key = jax.random.PRNGKey(0)
    k_param, k_x, k_noise = jax.random.split(key, 3)

    params = init_params(k_param)

    # PyTorch-style inputs: x is NCT = (B, Cin, T); x_lengths valid frames.
    x = jax.random.normal(k_x, (BATCH, IN_CHANNELS, T_LEN), jnp.float32)
    x_lengths = jnp.array([T_LEN, 11], dtype=jnp.int32)
    # torch.randn_like(m) equivalent, generated outside and consumed in-kernel.
    noise = jax.random.normal(k_noise, (BATCH, OUT_CHANNELS, T_LEN), jnp.float32)

    z, m, logs, x_mask = posterior_encoder_forward(x, x_lengths, noise, params)
    jax.block_until_ready((z, m, logs, x_mask))

    assert z.shape == (BATCH, OUT_CHANNELS, T_LEN)
    assert m.shape == (BATCH, OUT_CHANNELS, T_LEN)
    assert logs.shape == (BATCH, OUT_CHANNELS, T_LEN)
    assert x_mask.shape == (BATCH, 1, T_LEN)
    print("KERNEL_OK")
</pallas_src>

<mosaic_0001>
module attributes {stable_mosaic.version = 11 : i64} {
  func.func @_posterior_encoder_kernel(%arg0: i32, %arg1: memref<2xi32, #tpu.memory_space<smem>>, %arg2: memref<1x16x8xf32, #tpu.memory_space<vmem>>, %arg3: memref<1x16x4xf32, #tpu.memory_space<vmem>>, %arg4: memref<8x16xbf16, #tpu.memory_space<vmem>>, %arg5: memref<1x16xf32, #tpu.memory_space<vmem>>, %arg6: memref<3x80x32xbf16, #tpu.memory_space<vmem>>, %arg7: memref<3x1x32xf32, #tpu.memory_space<vmem>>, %arg8: memref<2x16x32xbf16, #tpu.memory_space<vmem>>, %arg9: memref<2x1x32xf32, #tpu.memory_space<vmem>>, %arg10: memref<16x16xbf16, #tpu.memory_space<vmem>>, %arg11: memref<1x16xf32, #tpu.memory_space<vmem>>, %arg12: memref<16x8xbf16, #tpu.memory_space<vmem>>, %arg13: memref<1x8xf32, #tpu.memory_space<vmem>>, %arg14: memref<1x16x12xf32, #tpu.memory_space<vmem>>, %arg15: memref<32x16xf32, #tpu.memory_space<vmem>>) attributes {dimension_semantics = [#tpu.dimension_semantics<parallel>], iteration_bounds = array<i64: 2>, scalar_prefetch = 1 : i64, scratch_operands = 1 : i64, tpu.core_type = #tpu.core_type<tc>, window_params = [{transform_indices = @transform_0, window_bounds = array<i64: 1, 16, 8>}, {transform_indices = @transform_1, window_bounds = array<i64: 1, 16, 4>}, {pipeline_mode = #tpu.pipeline_mode<synchronous>, transform_indices = @transform_2, window_bounds = array<i64: 8, 16>}, {pipeline_mode = #tpu.pipeline_mode<synchronous>, transform_indices = @transform_3, window_bounds = array<i64: 1, 16>}, {pipeline_mode = #tpu.pipeline_mode<synchronous>, transform_indices = @transform_4, window_bounds = array<i64: 3, 80, 32>}, {pipeline_mode = #tpu.pipeline_mode<synchronous>, transform_indices = @transform_5, window_bounds = array<i64: 3, 1, 32>}, {pipeline_mode = #tpu.pipeline_mode<synchronous>, transform_indices = @transform_6, window_bounds = array<i64: 2, 16, 32>}, {pipeline_mode = #tpu.pipeline_mode<synchronous>, transform_indices = @transform_7, window_bounds = array<i64: 2, 1, 32>}, {pipeline_mode = #tpu.pipeline_mode<synchronous>, transform_indices = @transform_8, window_bounds = array<i64: 16, 16>}, {pipeline_mode = #tpu.pipeline_mode<synchronous>, transform_indices = @transform_9, window_bounds = array<i64: 1, 16>}, {pipeline_mode = #tpu.pipeline_mode<synchronous>, transform_indices = @transform_10, window_bounds = array<i64: 16, 8>}, {pipeline_mode = #tpu.pipeline_mode<synchronous>, transform_indices = @transform_11, window_bounds = array<i64: 1, 8>}, {transform_indices = @transform_12, window_bounds = array<i64: 1, 16, 12>}]} {
    %0 = arith.index_cast %arg0 : i32 to index
    %1 = memref.load %arg1[%0] : memref<2xi32, #tpu.memory_space<smem>>
    %2 = tpu.iota {dimensions = array<i32: 0>} : vector<16x1xi32>
    %3 = vector.broadcast %1 : i32 to vector<16x1xi32>
    %4 = arith.cmpi slt, %2, %3 : vector<16x1xi32>
    %5 = arith.extui %4 : vector<16x1xi1> to vector<16x1xi32>
    %6 = arith.sitofp %5 : vector<16x1xi32> to vector<16x1xf32>
    %c0 = arith.constant 0 : index
    %c0_0 = arith.constant 0 : index
    %c0_1 = arith.constant 0 : index
    %7 = vector.load %arg2[%c0, %c0_0, %c0_1] : memref<1x16x8xf32, #tpu.memory_space<vmem>>, vector<1x16x8xf32>
    %8 = vector.shape_cast %7 : vector<1x16x8xf32> to vector<16x8xf32>
    %9 = arith.truncf %8 : vector<16x8xf32> to vector<16x8xbf16>
    %c0_2 = arith.constant 0 : index
    %c0_3 = arith.constant 0 : index
    %10 = vector.load %arg4[%c0_2, %c0_3] : memref<8x16xbf16, #tpu.memory_space<vmem>>, vector<8x16xbf16>
    %cst = arith.constant dense<0.000000e+00> : vector<16x16xf32>
    %11 = tpu.matmul %9, %10, %cst {dimension_numbers = #tpu.dot_dimension_numbers<[1], [0], [0], [1], [0, 0, 1, 1], [], []>} : vector<16x8xbf16>, vector<8x16xbf16>, vector<16x16xf32> -> vector<16x16xf32>
    %c0_4 = arith.constant 0 : index
    %c0_5 = arith.constant 0 : index
    %12 = vector.load %arg5[%c0_4, %c0_5] : memref<1x16xf32, #tpu.memory_space<vmem>>, vector<1x16xf32>
    %13 = vector.broadcast %12 : vector<1x16xf32> to vector<16x16xf32>
    %14 = arith.addf %11, %13 : vector<16x16xf32>
    %15 = vector.broadcast %6 : vector<16x1xf32> to vector<16x16xf32>
    %16 = arith.mulf %14, %15 : vector<16x16xf32>
    %cst_6 = arith.constant 0.000000e+00 : f32
    %17 = vector.broadcast %cst_6 : f32 to vector<32x16xf32>
    %c0_7 = arith.constant 0 : index
    %c0_8 = arith.constant 0 : index
    %18 = vector.load %arg15[%c0_7, %c0_8] : memref<32x16xf32, #tpu.memory_space<vmem>>, vector<32x16xf32>
    tpu.vector_store %arg15[%c0_7, %c0_8], %17 {strides = array<i32>} : memref<32x16xf32, #tpu.memory_space<vmem>>, vector<32x16xf32>,
    %c8 = arith.constant 8 : index
    %c0_9 = arith.constant 0 : index
    %19 = vector.load %arg15[%c8, %c0_9] : memref<32x16xf32, #tpu.memory_space<vmem>>, vector<16x16xf32>
    tpu.vector_store %arg15[%c8, %c0_9], %16 {strides = array<i32>} : memref<32x16xf32, #tpu.memory_space<vmem>>, vector<16x16xf32>,
    %c6 = arith.constant 6 : index
    %c0_10 = arith.constant 0 : index
    %20 = vector.load %arg15[%c6, %c0_10] : memref<32x16xf32, #tpu.memory_space<vmem>>, vector<16x16xf32>
    %c7 = arith.constant 7 : index
    %c0_11 = arith.constant 0 : index
    %21 = vector.load %arg15[%c7, %c0_11] : memref<32x16xf32, #tpu.memory_space<vmem>>, vector<16x16xf32>
    %c8_12 = arith.constant 8 : index
    %c0_13 = arith.constant 0 : index
    %22 = vector.load %arg15[%c8_12, %c0_13] : memref<32x16xf32, #tpu.memory_space<vmem>>, vector<16x16xf32>
    %c9 = arith.constant 9 : index
    %c0_14 = arith.constant 0 : index
    %23 = vector.load %arg15[%c9, %c0_14] : memref<32x16xf32, #tpu.memory_space<vmem>>, vector<16x16xf32>
    %c10 = arith.constant 10 : index
    %c0_15 = arith.constant 0 : index
    %24 = vector.load %arg15[%c10, %c0_15] : memref<32x16xf32, #tpu.memory_space<vmem>>, vector<16x16xf32>
    %25 = tpu.concatenate %20, %21, %22, %23, %24 in 1 : vector<16x16xf32>, vector<16x16xf32>, vector<16x16xf32>, vector<16x16xf32>, vector<16x16xf32> -> vector<16x80xf32>
    %26 = arith.truncf %25 : vector<16x80xf32> to vector<16x80xbf16>
    %c0_16 = arith.constant 0 : index
    %c0_17 = arith.constant 0 : index
    %c0_18 = arith.constant 0 : index
    %27 = vector.load %arg6[%c0_16, %c0_17, %c0_18] : memref<3x80x32xbf16, #tpu.memory_space<vmem>>, vector<1x80x32xbf16>
    %28 = vector.shape_cast %27 : vector<1x80x32xbf16> to vector<80x32xbf16>
    %cst_19 = arith.constant dense<0.000000e+00> : vector<16x32xf32>
    %29 = tpu.matmul %26, %28, %cst_19 {dimension_numbers = #tpu.dot_dimension_numbers<[1], [0], [0], [1], [0, 0, 1, 1], [], []>} : vector<16x80xbf16>, vector<80x32xbf16>, vector<16x32xf32> -> vector<16x32xf32>
    %c0_20 = arith.constant 0 : index
    %c0_21 = arith.constant 0 : index
    %c0_22 = arith.constant 0 : index
    %30 = vector.load %arg7[%c0_20, %c0_21, %c0_22] : memref<3x1x32xf32, #tpu.memory_space<vmem>>, vector<1x1x32xf32>
    %31 = vector.shape_cast %30 : vector<1x1x32xf32> to vector<1x32xf32>
    %32 = vector.broadcast %31 : vector<1x32xf32> to vector<16x32xf32>
    %33 = arith.addf %29, %32 : vector<16x32xf32>
    %34 = vector.extract_strided_slice %33 {offsets = [0, 0], sizes = [16, 16], strides = [1, 1]} : vector<16x32xf32> to vector<16x16xf32>
    %35 = math.tanh %34 : vector<16x16xf32>
    %36 = vector.extract_strided_slice %33 {offsets = [0, 16], sizes = [16, 16], strides = [1, 1]} : vector<16x32xf32> to vector<16x16xf32>
    %37 = arith.negf %36 : vector<16x16xf32>
    %38 = math.exp %37 : vector<16x16xf32>
    %cst_23 = arith.constant 1.000000e+00 : f32
    %39 = vector.broadcast %cst_23 : f32 to vector<16x16xf32>
    %40 = arith.addf %39, %38 : vector<16x16xf32>
    %41 = arith.divf %39, %40 : vector<16x16xf32>
    %42 = arith.mulf %35, %41 : vector<16x16xf32>
    %43 = arith.truncf %42 : vector<16x16xf32> to vector<16x16xbf16>
    %c0_24 = arith.constant 0 : index
    %c0_25 = arith.constant 0 : index
    %c0_26 = arith.constant 0 : index
    %44 = vector.load %arg8[%c0_24, %c0_25, %c0_26] : memref<2x16x32xbf16, #tpu.memory_space<vmem>>, vector<1x16x32xbf16>
    %45 = vector.shape_cast %44 : vector<1x16x32xbf16> to vector<16x32xbf16>
    %cst_27 = arith.constant dense<0.000000e+00> : vector<16x32xf32>
    %46 = tpu.matmul %43, %45, %cst_27 {dimension_numbers = #tpu.dot_dimension_numbers<[1], [0], [0], [1], [0, 0, 1, 1], [], []>} : vector<16x16xbf16>, vector<16x32xbf16>, vector<16x32xf32> -> vector<16x32xf32>
    %c0_28 = arith.constant 0 : index
    %c0_29 = arith.constant 0 : index
    %c0_30 = arith.constant 0 : index
    %47 = vector.load %arg9[%c0_28, %c0_29, %c0_30] : memref<2x1x32xf32, #tpu.memory_space<vmem>>, vector<1x1x32xf32>
    %48 = vector.shape_cast %47 : vector<1x1x32xf32> to vector<1x32xf32>
    %49 = vector.broadcast %48 : vector<1x32xf32> to vector<16x32xf32>
    %50 = arith.addf %46, %49 : vector<16x32xf32>
    %51 = vector.extract_strided_slice %50 {offsets = [0, 0], sizes = [16, 16], strides = [1, 1]} : vector<16x32xf32> to vector<16x16xf32>
    %52 = arith.addf %16, %51 : vector<16x16xf32>
    %53 = vector.broadcast %6 : vector<16x1xf32> to vector<16x16xf32>
    %54 = arith.mulf %52, %53 : vector<16x16xf32>
    %55 = vector.extract_strided_slice %50 {offsets = [0, 16], sizes = [16, 16], strides = [1, 1]} : vector<16x32xf32> to vector<16x16xf32>
    %c8_31 = arith.constant 8 : index
    %c0_32 = arith.constant 0 : index
    %56 = vector.load %arg15[%c8_31, %c0_32] : memref<32x16xf32, #tpu.memory_space<vmem>>, vector<16x16xf32>
    tpu.vector_store %arg15[%c8_31, %c0_32], %54 {strides = array<i32>} : memref<32x16xf32, #tpu.memory_space<vmem>>, vector<16x16xf32>,
    %c4 = arith.constant 4 : index
    %c0_33 = arith.constant 0 : index
    %57 = vector.load %arg15[%c4, %c0_33] : memref<32x16xf32, #tpu.memory_space<vmem>>, vector<16x16xf32>
    %c6_34 = arith.constant 6 : index
    %c0_35 = arith.constant 0 : index
    %58 = vector.load %arg15[%c6_34, %c0_35] : memref<32x16xf32, #tpu.memory_space<vmem>>, vector<16x16xf32>
    %c8_36 = arith.constant 8 : index
    %c0_37 = arith.constant 0 : index
    %59 = vector.load %arg15[%c8_36, %c0_37] : memref<32x16xf32, #tpu.memory_space<vmem>>, vector<16x16xf32>
    %c10_38 = arith.constant 10 : index
    %c0_39 = arith.constant 0 : index
    %60 = vector.load %arg15[%c10_38, %c0_39] : memref<32x16xf32, #tpu.memory_space<vmem>>, vector<16x16xf32>
    %c12 = arith.constant 12 : index
    %c0_40 = arith.constant 0 : index
    %61 = vector.load %arg15[%c12, %c0_40] : memref<32x16xf32, #tpu.memory_space<vmem>>, vector<16x16xf32>
    %62 = tpu.concatenate %57, %58, %59, %60, %61 in 1 : vector<16x16xf32>, vector<16x16xf32>, vector<16x16xf32>, vector<16x16xf32>, vector<16x16xf32> -> vector<16x80xf32>
    %63 = arith.truncf %62 : vector<16x80xf32> to vector<16x80xbf16>
    %c1 = arith.constant 1 : index
    %c0_41 = arith.constant 0 : index
    %c0_42 = arith.constant 0 : index
    %64 = vector.load %arg6[%c1, %c0_41, %c0_42] : memref<3x80x32xbf16, #tpu.memory_space<vmem>>, vector<1x80x32xbf16>
    %65 = vector.shape_cast %64 : vector<1x80x32xbf16> to vector<80x32xbf16>
    %cst_43 = arith.constant dense<0.000000e+00> : vector<16x32xf32>
    %66 = tpu.matmul %63, %65, %cst_43 {dimension_numbers = #tpu.dot_dimension_numbers<[1], [0], [0], [1], [0, 0, 1, 1], [], []>} : vector<16x80xbf16>, vector<80x32xbf16>, vector<16x32xf32> -> vector<16x32xf32>
    %c1_44 = arith.constant 1 : index
    %c0_45 = arith.constant 0 : index
    %c0_46 = arith.constant 0 : index
    %67 = vector.load %arg7[%c1_44, %c0_45, %c0_46] : memref<3x1x32xf32, #tpu.memory_space<vmem>>, vector<1x1x32xf32>
    %68 = vector.shape_cast %67 : vector<1x1x32xf32> to vector<1x32xf32>
    %69 = vector.broadcast %68 : vector<1x32xf32> to vector<16x32xf32>
    %70 = arith.addf %66, %69 : vector<16x32xf32>
    %71 = vector.extract_strided_slice %70 {offsets = [0, 0], sizes = [16, 16], strides = [1, 1]} : vector<16x32xf32> to vector<16x16xf32>
    %72 = math.tanh %71 : vector<16x16xf32>
    %73 = vector.extract_strided_slice %70 {offsets = [0, 16], sizes = [16, 16], strides = [1, 1]} : vector<16x32xf32> to vector<16x16xf32>
    %74 = arith.negf %73 : vector<16x16xf32>
    %75 = math.exp %74 : vector<16x16xf32>
    %cst_47 = arith.constant 1.000000e+00 : f32
    %76 = vector.broadcast %cst_47 : f32 to vector<16x16xf32>
    %77 = arith.addf %76, %75 : vector<16x16xf32>
    %78 = arith.divf %76, %77 : vector<16x16xf32>
    %79 = arith.mulf %72, %78 : vector<16x16xf32>
    %80 = arith.truncf %79 : vector<16x16xf32> to vector<16x16xbf16>
    %c1_48 = arith.constant 1 : index
    %c0_49 = arith.constant 0 : index
    %c0_50 = arith.constant 0 : index
    %81 = vector.load %arg8[%c1_48, %c0_49, %c0_50] : memref<2x16x32xbf16, #tpu.memory_space<vmem>>, vector<1x16x32xbf16>
    %82 = vector.shape_cast %81 : vector<1x16x32xbf16> to vector<16x32xbf16>
    %cst_51 = arith.constant dense<0.000000e+00> : vector<16x32xf32>
    %83 = tpu.matmul %80, %82, %cst_51 {dimension_numbers = #tpu.dot_dimension_numbers<[1], [0], [0], [1], [0, 0, 1, 1], [], []>} : vector<16x16xbf16>, vector<16x32xbf16>, vector<16x32xf32> -> vector<16x32xf32>
    %c1_52 = arith.constant 1 : index
    %c0_53 = arith.constant 0 : index
    %c0_54 = arith.constant 0 : index
    %84 = vector.load %arg9[%c1_52, %c0_53, %c0_54] : memref<2x1x32xf32, #tpu.memory_space<vmem>>, vector<1x1x32xf32>
    %85 = vector.shape_cast %84 : vector<1x1x32xf32> to vector<1x32xf32>
    %86 = vector.broadcast %85 : vector<1x32xf32> to vector<16x32xf32>
    %87 = arith.addf %83, %86 : vector<16x32xf32>
    %88 = vector.extract_strided_slice %87 {offsets = [0, 0], sizes = [16, 16], strides = [1, 1]} : vector<16x32xf32> to vector<16x16xf32>
    %89 = arith.addf %54, %88 : vector<16x16xf32>
    %90 = vector.broadcast %6 : vector<16x1xf32> to vector<16x16xf32>
    %91 = arith.mulf %89, %90 : vector<16x16xf32>
    %92 = vector.extract_strided_slice %87 {offsets = [0, 16], sizes = [16, 16], strides = [1, 1]} : vector<16x32xf32> to vector<16x16xf32>
    %93 = arith.addf %55, %92 : vector<16x16xf32>
    %c8_55 = arith.constant 8 : index
    %c0_56 = arith.constant 0 : index
    %94 = vector.load %arg15[%c8_55, %c0_56] : memref<32x16xf32, #tpu.memory_space<vmem>>, vector<16x16xf32>
    tpu.vector_store %arg15[%c8_55, %c0_56], %91 {strides = array<i32>} : memref<32x16xf32, #tpu.memory_space<vmem>>, vector<16x16xf32>,
    %c0_57 = arith.constant 0 : index
    %c0_58 = arith.constant 0 : index
    %95 = vector.load %arg15[%c0_57, %c0_58] : memref<32x16xf32, #tpu.memory_space<vmem>>, vector<16x16xf32>
    %c4_59 = arith.constant 4 : index
    %c0_60 = arith.constant 0 : index
    %96 = vector.load %arg15[%c4_59, %c0_60] : memref<32x16xf32, #tpu.memory_space<vmem>>, vector<16x16xf32>
    %c8_61 = arith.constant 8 : index
    %c0_62 = arith.constant 0 : index
    %97 = vector.load %arg15[%c8_61, %c0_62] : memref<32x16xf32, #tpu.memory_space<vmem>>, vector<16x16xf32>
    %c12_63 = arith.constant 12 : index
    %c0_64 = arith.constant 0 : index
    %98 = vector.load %arg15[%c12_63, %c0_64] : memref<32x16xf32, #tpu.memory_space<vmem>>, vector<16x16xf32>
    %c16 = arith.constant 16 : index
    %c0_65 = arith.constant 0 : index
    %99 = vector.load %arg15[%c16, %c0_65] : memref<32x16xf32, #tpu.memory_space<vmem>>, vector<16x16xf32>
    %100 = tpu.concatenate %95, %96, %97, %98, %99 in 1 : vector<16x16xf32>, vector<16x16xf32>, vector<16x16xf32>, vector<16x16xf32>, vector<16x16xf32> -> vector<16x80xf32>
    %101 = arith.truncf %100 : vector<16x80xf32> to vector<16x80xbf16>
    %c2 = arith.constant 2 : index
    %c0_66 = arith.constant 0 : index
    %c0_67 = arith.constant 0 : index
    %102 = vector.load %arg6[%c2, %c0_66, %c0_67] : memref<3x80x32xbf16, #tpu.memory_space<vmem>>, vector<1x80x32xbf16>
    %103 = vector.shape_cast %102 : vector<1x80x32xbf16> to vector<80x32xbf16>
    %cst_68 = arith.constant dense<0.000000e+00> : vector<16x32xf32>
    %104 = tpu.matmul %101, %103, %cst_68 {dimension_numbers = #tpu.dot_dimension_numbers<[1], [0], [0], [1], [0, 0, 1, 1], [], []>} : vector<16x80xbf16>, vector<80x32xbf16>, vector<16x32xf32> -> vector<16x32xf32>
    %c2_69 = arith.constant 2 : index
    %c0_70 = arith.constant 0 : index
    %c0_71 = arith.constant 0 : index
    %105 = vector.load %arg7[%c2_69, %c0_70, %c0_71] : memref<3x1x32xf32, #tpu.memory_space<vmem>>, vector<1x1x32xf32>
    %106 = vector.shape_cast %105 : vector<1x1x32xf32> to vector<1x32xf32>
    %107 = vector.broadcast %106 : vector<1x32xf32> to vector<16x32xf32>
    %108 = arith.addf %104, %107 : vector<16x32xf32>
    %109 = vector.extract_strided_slice %108 {offsets = [0, 0], sizes = [16, 16], strides = [1, 1]} : vector<16x32xf32> to vector<16x16xf32>
    %110 = math.tanh %109 : vector<16x16xf32>
    %111 = vector.extract_strided_slice %108 {offsets = [0, 16], sizes = [16, 16], strides = [1, 1]} : vector<16x32xf32> to vector<16x16xf32>
    %112 = arith.negf %111 : vector<16x16xf32>
    %113 = math.exp %112 : vector<16x16xf32>
    %cst_72 = arith.constant 1.000000e+00 : f32
    %114 = vector.broadcast %cst_72 : f32 to vector<16x16xf32>
    %115 = arith.addf %114, %113 : vector<16x16xf32>
    %116 = arith.divf %114, %115 : vector<16x16xf32>
    %117 = arith.mulf %110, %116 : vector<16x16xf32>
    %118 = arith.truncf %117 : vector<16x16xf32> to vector<16x16xbf16>
    %c0_73 = arith.constant 0 : index
    %c0_74 = arith.constant 0 : index
    %119 = vector.load %arg10[%c0_73, %c0_74] : memref<16x16xbf16, #tpu.memory_space<vmem>>, vector<16x16xbf16>
    %cst_75 = arith.constant dense<0.000000e+00> : vector<16x16xf32>
    %120 = tpu.matmul %118, %119, %cst_75 {dimension_numbers = #tpu.dot_dimension_numbers<[1], [0], [0], [1], [0, 0, 1, 1], [], []>} : vector<16x16xbf16>, vector<16x16xbf16>, vector<16x16xf32> -> vector<16x16xf32>
    %c0_76 = arith.constant 0 : index
    %c0_77 = arith.constant 0 : index
    %121 = vector.load %arg11[%c0_76, %c0_77] : memref<1x16xf32, #tpu.memory_space<vmem>>, vector<1x16xf32>
    %122 = vector.broadcast %121 : vector<1x16xf32> to vector<16x16xf32>
    %123 = arith.addf %120, %122 : vector<16x16xf32>
    %124 = arith.addf %93, %123 : vector<16x16xf32>
    %125 = vector.broadcast %6 : vector<16x1xf32> to vector<16x16xf32>
    %126 = arith.mulf %124, %125 : vector<16x16xf32>
    %127 = arith.truncf %126 : vector<16x16xf32> to vector<16x16xbf16>
    %c0_78 = arith.constant 0 : index
    %c0_79 = arith.constant 0 : index
    %128 = vector.load %arg12[%c0_78, %c0_79] : memref<16x8xbf16, #tpu.memory_space<vmem>>, vector<16x8xbf16>
    %cst_80 = arith.constant dense<0.000000e+00> : vector<16x8xf32>
    %129 = tpu.matmul %127, %128, %cst_80 {dimension_numbers = #tpu.dot_dimension_numbers<[1], [0], [0], [1], [0, 0, 1, 1], [], []>} : vector<16x16xbf16>, vector<16x8xbf16>, vector<16x8xf32> -> vector<16x8xf32>
    %c0_81 = arith.constant 0 : index
    %c0_82 = arith.constant 0 : index
    %130 = vector.load %arg13[%c0_81, %c0_82] : memref<1x8xf32, #tpu.memory_space<vmem>>, vector<1x8xf32>
    %131 = vector.broadcast %130 : vector<1x8xf32> to vector<16x8xf32>
    %132 = arith.addf %129, %131 : vector<16x8xf32>
    %133 = vector.broadcast %6 : vector<16x1xf32> to vector<16x8xf32>
    %134 = arith.mulf %132, %133 : vector<16x8xf32>
    %135 = vector.extract_strided_slice %134 {offsets = [0, 0], sizes = [16, 4], strides = [1, 1]} : vector<16x8xf32> to vector<16x4xf32>
    %136 = vector.extract_strided_slice %134 {offsets = [0, 4], sizes = [16, 4], strides = [1, 1]} : vector<16x8xf32> to vector<16x4xf32>
    %c0_83 = arith.constant 0 : index
    %c0_84 = arith.constant 0 : index
    %c0_85 = arith.constant 0 : index
    %137 = vector.load %arg3[%c0_83, %c0_84, %c0_85] : memref<1x16x4xf32, #tpu.memory_space<vmem>>, vector<1x16x4xf32>
    %138 = vector.shape_cast %137 : vector<1x16x4xf32> to vector<16x4xf32>
    %139 = math.exp %136 : vector<16x4xf32>
    %140 = arith.mulf %138, %139 : vector<16x4xf32>
    %141 = arith.addf %135, %140 : vector<16x4xf32>
    %142 = vector.broadcast %6 : vector<16x1xf32> to vector<16x4xf32>
    %143 = arith.mulf %141, %142 : vector<16x4xf32>
    %144 = tpu.concatenate %143, %134 in 1 : vector<16x4xf32>, vector<16x8xf32> -> vector<16x12xf32>
    %c0_86 = arith.constant 0 : index
    %c0_87 = arith.constant 0 : index
    %c0_88 = arith.constant 0 : index
    %145 = vector.load %arg14[%c0_86, %c0_87, %c0_88] : memref<1x16x12xf32, #tpu.memory_space<vmem>>, vector<1x16x12xf32>
    %146 = vector.shape_cast %145 : vector<1x16x12xf32> to vector<16x12xf32>
    %147 = vector.shape_cast %144 : vector<16x12xf32> to vector<1x16x12xf32>
    tpu.vector_store %arg14[%c0_86, %c0_87, %c0_88], %147 {strides = array<i32>} : memref<1x16x12xf32, #tpu.memory_space<vmem>>, vector<1x16x12xf32>,
    return
  }
  func.func @transform_0(%arg0: i32, %arg1: memref<2xi32, #tpu.memory_space<smem>>) -> (i32, i32, i32) {
    %c0_i32 = arith.constant 0 : i32
    %c0_i32_0 = arith.constant 0 : i32
    %c0_i32_1 = arith.constant 0 : i32
    return %arg0, %c0_i32, %c0_i32_0 : i32, i32, i32
  }
  func.func @transform_1(%arg0: i32, %arg1: memref<2xi32, #tpu.memory_space<smem>>) -> (i32, i32, i32) {
    %c0_i32 = arith.constant 0 : i32
    %c0_i32_0 = arith.constant 0 : i32
    %c0_i32_1 = arith.constant 0 : i32
    return %arg0, %c0_i32, %c0_i32_0 : i32, i32, i32
  }
  func.func @transform_2(%arg0: i32, %arg1: memref<2xi32, #tpu.memory_space<smem>>) -> (i32, i32) {
    %c0_i32 = arith.constant 0 : i32
    %c0_i32_0 = arith.constant 0 : i32
    %c0_i32_1 = arith.constant 0 : i32
    return %c0_i32, %c0_i32_0 : i32, i32
  }
  func.func @transform_3(%arg0: i32, %arg1: memref<2xi32, #tpu.memory_space<smem>>) -> (i32, i32) {
    %c0_i32 = arith.constant 0 : i32
    %c0_i32_0 = arith.constant 0 : i32
    %c0_i32_1 = arith.constant 0 : i32
    return %c0_i32, %c0_i32_0 : i32, i32
  }
  func.func @transform_4(%arg0: i32, %arg1: memref<2xi32, #tpu.memory_space<smem>>) -> (i32, i32, i32) {
    %c0_i32 = arith.constant 0 : i32
    %c0_i32_0 = arith.constant 0 : i32
    %c0_i32_1 = arith.constant 0 : i32
    %c0_i32_2 = arith.constant 0 : i32
    return %c0_i32, %c0_i32_0, %c0_i32_1 : i32, i32, i32
  }
  func.func @transform_5(%arg0: i32, %arg1: memref<2xi32, #tpu.memory_space<smem>>) -> (i32, i32, i32) {
    %c0_i32 = arith.constant 0 : i32
    %c0_i32_0 = arith.constant 0 : i32
    %c0_i32_1 = arith.constant 0 : i32
    %c0_i32_2 = arith.constant 0 : i32
    return %c0_i32, %c0_i32_0, %c0_i32_1 : i32, i32, i32
  }
  func.func @transform_6(%arg0: i32, %arg1: memref<2xi32, #tpu.memory_space<smem>>) -> (i32, i32, i32) {
    %c0_i32 = arith.constant 0 : i32
    %c0_i32_0 = arith.constant 0 : i32
    %c0_i32_1 = arith.constant 0 : i32
    %c0_i32_2 = arith.constant 0 : i32
    return %c0_i32, %c0_i32_0, %c0_i32_1 : i32, i32, i32
  }
  func.func @transform_7(%arg0: i32, %arg1: memref<2xi32, #tpu.memory_space<smem>>) -> (i32, i32, i32) {
    %c0_i32 = arith.constant 0 : i32
    %c0_i32_0 = arith.constant 0 : i32
    %c0_i32_1 = arith.constant 0 : i32
    %c0_i32_2 = arith.constant 0 : i32
    return %c0_i32, %c0_i32_0, %c0_i32_1 : i32, i32, i32
  }
  func.func @transform_8(%arg0: i32, %arg1: memref<2xi32, #tpu.memory_space<smem>>) -> (i32, i32) {
    %c0_i32 = arith.constant 0 : i32
    %c0_i32_0 = arith.constant 0 : i32
    %c0_i32_1 = arith.constant 0 : i32
    return %c0_i32, %c0_i32_0 : i32, i32
  }
  func.func @transform_9(%arg0: i32, %arg1: memref<2xi32, #tpu.memory_space<smem>>) -> (i32, i32) {
    %c0_i32 = arith.constant 0 : i32
    %c0_i32_0 = arith.constant 0 : i32
    %c0_i32_1 = arith.constant 0 : i32
    return %c0_i32, %c0_i32_0 : i32, i32
  }
  func.func @transform_10(%arg0: i32, %arg1: memref<2xi32, #tpu.memory_space<smem>>) -> (i32, i32) {
    %c0_i32 = arith.constant 0 : i32
    %c0_i32_0 = arith.constant 0 : i32
    %c0_i32_1 = arith.constant 0 : i32
    return %c0_i32, %c0_i32_0 : i32, i32
  }
  func.func @transform_11(%arg0: i32, %arg1: memref<2xi32, #tpu.memory_space<smem>>) -> (i32, i32) {
    %c0_i32 = arith.constant 0 : i32
    %c0_i32_0 = arith.constant 0 : i32
    %c0_i32_1 = arith.constant 0 : i32
    return %c0_i32, %c0_i32_0 : i32, i32
  }
  func.func @transform_12(%arg0: i32, %arg1: memref<2xi32, #tpu.memory_space<smem>>) -> (i32, i32, i32) {
    %c0_i32 = arith.constant 0 : i32
    %c0_i32_0 = arith.constant 0 : i32
    %c0_i32_1 = arith.constant 0 : i32
    return %arg0, %c0_i32, %c0_i32_0 : i32, i32, i32
  }
}

</mosaic_0001>

<llo_original>
// kernel: tpu_custom_call.1
$region0: #{tpu_custom_call.1}
  #allocation0 [shape = 'u32[]', space=smem, size = 0x4, offset = 0x4, fixed_abs, tag = 'smem constant byte address 0x4 - core index']
  #allocation1 [shape = 'u32[144,128]{1,0:T(1,128)}', space=vmem, size = 0x12000, scoped, tag = 'internal scratch']
  #allocation2 [shape = 'f32[32,16]{1,0:T(8,128)}', space=vmem, size = 0x4000, scoped, tag = 'scratch operand']
  #allocation3 [shape = 's32[1]{0}', space=sflag, size = 0x4, scoped, tag = 'scoped memory for tpu_custom_call.1']
  #allocation4 [shape = 'u8[512]{0}', space=smem, size = 0x200, scoped, tag = 'prefetched SMEM operand 0']
  %s0 = inlined_call_operand.vmem [shape: s32[2], index: 0, kind: input, shape index: {}]
  %s1 = inlined_call_operand.vmem [shape: f32[2,16,8], index: 1, kind: input, shape index: {}]
  %s2 = inlined_call_operand.vmem [shape: f32[2,16,4], index: 2, kind: input, shape index: {}]
  %s3 = inlined_call_operand.vmem [shape: bf16[8,16], index: 3, kind: input, shape index: {}]
  %s4 = inlined_call_operand.vmem [shape: f32[1,16], index: 4, kind: input, shape index: {}]
  %s5 = inlined_call_operand.vmem [shape: bf16[3,80,32], index: 5, kind: input, shape index: {}]
  %s6 = inlined_call_operand.vmem [shape: f32[3,1,32], index: 6, kind: input, shape index: {}]
  %s7 = inlined_call_operand.vmem [shape: bf16[2,16,32], index: 7, kind: input, shape index: {}]
  %s8 = inlined_call_operand.vmem [shape: f32[2,1,32], index: 8, kind: input, shape index: {}]
  %s9 = inlined_call_operand.vmem [shape: bf16[16,16], index: 9, kind: input, shape index: {}]
  %s10 = inlined_call_operand.vmem [shape: f32[1,16], index: 10, kind: input, shape index: {}]
  %s11 = inlined_call_operand.vmem [shape: bf16[16,8], index: 11, kind: input, shape index: {}]
  %s12 = inlined_call_operand.vmem [shape: f32[1,8], index: 12, kind: input, shape index: {}]
  %s13 = inlined_call_operand.vmem [shape: f32[2,16,12], index: 13, kind: output, shape index: {}]
  %s14 = sld [smem:[#allocation0]]
  $region81: #{tpu_custom_call.1} parent=0
    _
  %s16 = ssub.s32 1, %s14
  %s17 = scalar_select 0, %s16, %s14
  %s18 = sshll.u32 %s0, 4
  %s19 = int_to_ptr.vmem [resolvable:$true] %s18
  %21 = dma.vmem_to_smem %s19, 16, [#allocation4], [#allocation3]
  %22 = dma.done [#allocation3], 16
  %23 = sfence
  loop: start=0, step=1, limit=4
  $region2: #{tpu_custom_call.1} parent=0 // loop_pre_header
    _
  $region3: #{tpu_custom_call.1} parent=0 // loop_header
    %s25 = sphi 0, %s29
    %p26 = scmp.ge.s32.totalorder %s25, 4
    %s35 = sphi 0, %s37
    %s38 = sphi 0, %s35
    %s39 = sphi 0, %s38
    %s55 = sphi 0, %s39
    %s61 = sphi 0, %s63
    %s64 = sphi 0, %s61
    %s65 = sphi 0, %s64
    %s81 = sphi 0, %s65
    %s85 = sphi 0, %s85
    %s87 = sphi 0, %s85
    %s88 = sphi 0, %s87
    %s102 = sphi 0, %s88
    %s106 = sphi 0, %s106
    %s108 = sphi 0, %s106
    %s109 = sphi 0, %s108
    %s123 = sphi 0, %s109
    %s127 = sphi 0, %s127
    %s129 = sphi 0, %s127
    %s130 = sphi 0, %s129
    %s144 = sphi 0, %s130
    %s148 = sphi 0, %s148
    %s150 = sphi 0, %s148
    %s151 = sphi 0, %s150
    %s165 = sphi 0, %s151
    %s169 = sphi 0, %s169
    %s171 = sphi 0, %s169
    %s172 = sphi 0, %s171
    %s186 = sphi 0, %s172
    %s190 = sphi 0, %s190
    %s192 = sphi 0, %s190
    %s193 = sphi 0, %s192
    %s207 = sphi 0, %s193
    %s211 = sphi 0, %s211
    %s213 = sphi 0, %s211
    %s214 = sphi 0, %s213
    %s228 = sphi 0, %s214
    %s232 = sphi 0, %s232
    %s234 = sphi 0, %s232
    %s235 = sphi 0, %s234
    %s249 = sphi 0, %s235
    %s253 = sphi 0, %s253
    %s255 = sphi 0, %s253
    %s256 = sphi 0, %s255
    %s270 = sphi 0, %s256
    %s274 = sphi 0, %s274
    %s276 = sphi 0, %s274
    %s277 = sphi 0, %s276
    %s291 = sphi 0, %s277
    %s297 = sphi 0, %s299
    %s300 = sphi 0, %s297
    %s301 = sphi 0, %s300
    %s317 = sphi 0, %s301
  $region4: #{tpu_custom_call.1} parent=0 // loop_header_branch
    %28 = sbr.rel (%p26) target = $region8
  $region5: #{tpu_custom_call.1} parent=0 // loop_body
    %s30 = ssub.s32 %s25, 1
    %s31 = ssub.s32 %s25, 2
    %s32 = sadd.s32 %s25, 1
    %s33 = ssub.s32 %s25, %s32
    %p34 = scmp.eq.s32.totalorder %s33, 0
    %s36 = sadd.s32 %s35, 1
    %s37 = scalar_select %p34, %s35, %s36
    %p40 = pneg %p34
    %p41 = scmp.eq.s32.totalorder %s25, 1
    %p42 = por %p40, %p41
    %p43 = scmp.ne.s32.totalorder %s35, %s38
    %p44 = scmp.eq.s32.totalorder %s25, 0
    %p45 = por %p43, %p44
    %p46 = scmp.ne.s32.totalorder %s35, %s38
    %p47 = scmp.eq.s32.totalorder %s30, 1
    %p48 = por %p46, %p47
    %p49 = scmp.ne.s32.totalorder %s38, %s39
    %p50 = scmp.eq.s32.totalorder %s30, 0
    %p51 = por %p49, %p50
    %p52 = scmp.ne.s32.totalorder %s38, %s39
    %p53 = scmp.eq.s32.totalorder %s31, 1
    %p54 = por %p52, %p53
    %p56 = scmp.ne.s32.totalorder %s39, %s55
    %p57 = scmp.eq.s32.totalorder %s31, 0
    %p58 = por %p56, %p57
    %s59 = ssub.s32 %s25, %s32
    %p60 = scmp.eq.s32.totalorder %s59, 0
    %s62 = sadd.s32 %s61, 1
    %s63 = scalar_select %p60, %s61, %s62
    %p66 = pneg %p60
    %p67 = scmp.eq.s32.totalorder %s25, 1
    %p68 = por %p66, %p67
    %p69 = scmp.ne.s32.totalorder %s61, %s64
    %p70 = scmp.eq.s32.totalorder %s25, 0
    %p71 = por %p69, %p70
    %p72 = scmp.ne.s32.totalorder %s61, %s64
    %p73 = scmp.eq.s32.totalorder %s30, 1
    %p74 = por %p72, %p73
    %p75 = scmp.ne.s32.totalorder %s64, %s65
    %p76 = scmp.eq.s32.totalorder %s30, 0
    %p77 = por %p75, %p76
    %p78 = scmp.ne.s32.totalorder %s64, %s65
    %p79 = scmp.eq.s32.totalorder %s31, 1
    %p80 = por %p78, %p79
    %p82 = scmp.ne.s32.totalorder %s65, %s81
    %p83 = scmp.eq.s32.totalorder %s31, 0
    %p84 = por %p82, %p83
    %s86 = sadd.s32 %s85, 1
    %p89 = scmp.eq.s32.totalorder %s25, 1
    %p90 = scmp.ne.s32.totalorder %s85, %s87
    %p91 = scmp.eq.s32.totalorder %s25, 0
    %p92 = por %p90, %p91
    %p93 = scmp.ne.s32.totalorder %s85, %s87
    %p94 = scmp.eq.s32.totalorder %s30, 1
    %p95 = por %p93, %p94
    %p96 = scmp.ne.s32.totalorder %s87, %s88
    %p97 = scmp.eq.s32.totalorder %s30, 0
    %p98 = por %p96, %p97
    %p99 = scmp.ne.s32.totalorder %s87, %s88
    %p100 = scmp.eq.s32.totalorder %s31, 1
    %p101 = por %p99, %p100
    %p103 = scmp.ne.s32.totalorder %s88, %s102
    %p104 = scmp.eq.s32.totalorder %s31, 0
    %p105 = por %p103, %p104
    %s107 = sadd.s32 %s106, 1
    %p110 = scmp.eq.s32.totalorder %s25, 1
    %p111 = scmp.ne.s32.totalorder %s106, %s108
    %p112 = scmp.eq.s32.totalorder %s25, 0
    %p113 = por %p111, %p112
    %p114 = scmp.ne.s32.totalorder %s106, %s108
    %p115 = scmp.eq.s32.totalorder %s30, 1
    %p116 = por %p114, %p115
    %p117 = scmp.ne.s32.totalorder %s108, %s109
    %p118 = scmp.eq.s32.totalorder %s30, 0
    %p119 = por %p117, %p118
    %p120 = scmp.ne.s32.totalorder %s108, %s109
    %p121 = scmp.eq.s32.totalorder %s31, 1
    %p122 = por %p120, %p121
    %p124 = scmp.ne.s32.totalorder %s109, %s123
    %p125 = scmp.eq.s32.totalorder %s31, 0
    %p126 = por %p124, %p125
    %s128 = sadd.s32 %s127, 1
    %p131 = scmp.eq.s32.totalorder %s25, 1
    %p132 = scmp.ne.s32.totalorder %s127, %s129
    %p133 = scmp.eq.s32.totalorder %s25, 0
    %p134 = por %p132, %p133
    %p135 = scmp.ne.s32.totalorder %s127, %s129
    %p136 = scmp.eq.s32.totalorder %s30, 1
    %p137 = por %p135, %p136
    %p138 = scmp.ne.s32.totalorder %s129, %s130
    %p139 = scmp.eq.s32.totalorder %s30, 0
    %p140 = por %p138, %p139
    %p141 = scmp.ne.s32.totalorder %s129, %s130
    %p142 = scmp.eq.s32.totalorder %s31, 1
    %p143 = por %p141, %p142
    %p145 = scmp.ne.s32.totalorder %s130, %s144
    %p146 = scmp.eq.s32.totalorder %s31, 0
    %p147 = por %p145, %p146
    %s149 = sadd.s32 %s148, 1
    %p152 = scmp.eq.s32.totalorder %s25, 1
    %p153 = scmp.ne.s32.totalorder %s148, %s150
    %p154 = scmp.eq.s32.totalorder %s25, 0
    %p155 = por %p153, %p154
    %p156 = scmp.ne.s32.totalorder %s148, %s150
    %p157 = scmp.eq.s32.totalorder %s30, 1
    %p158 = por %p156, %p157
    %p159 = scmp.ne.s32.totalorder %s150, %s151
    %p160 = scmp.eq.s32.totalorder %s30, 0
    %p161 = por %p159, %p160
    %p162 = scmp.ne.s32.totalorder %s150, %s151
    %p163 = scmp.eq.s32.totalorder %s31, 1
    %p164 = por %p162, %p163
    %p166 = scmp.ne.s32.totalorder %s151, %s165
    %p167 = scmp.eq.s32.totalorder %s31, 0
    %p168 = por %p166, %p167
    %s170 = sadd.s32 %s169, 1
    %p173 = scmp.eq.s32.totalorder %s25, 1
    %p174 = scmp.ne.s32.totalorder %s169, %s171
    %p175 = scmp.eq.s32.totalorder %s25, 0
    %p176 = por %p174, %p175
    %p177 = scmp.ne.s32.totalorder %s169, %s171
    %p178 = scmp.eq.s32.totalorder %s30, 1
    %p179 = por %p177, %p178
    %p180 = scmp.ne.s32.totalorder %s171, %s172
    %p181 = scmp.eq.s32.totalorder %s30, 0
    %p182 = por %p180, %p181
    %p183 = scmp.ne.s32.totalorder %s171, %s172
    %p184 = scmp.eq.s32.totalorder %s31, 1
    %p185 = por %p183, %p184
    %p187 = scmp.ne.s32.totalorder %s172, %s186
    %p188 = scmp.eq.s32.totalorder %s31, 0
    %p189 = por %p187, %p188
    %s191 = sadd.s32 %s190, 1
    %p194 = scmp.eq.s32.totalorder %s25, 1
    %p195 = scmp.ne.s32.totalorder %s190, %s192
    %p196 = scmp.eq.s32.totalorder %s25, 0
    %p197 = por %p195, %p196
    %p198 = scmp.ne.s32.totalorder %s190, %s192
    %p199 = scmp.eq.s32.totalorder %s30, 1
    %p200 = por %p198, %p199
    %p201 = scmp.ne.s32.totalorder %s192, %s193
    %p202 = scmp.eq.s32.totalorder %s30, 0
    %p203 = por %p201, %p202
    %p204 = scmp.ne.s32.totalorder %s192, %s193
    %p205 = scmp.eq.s32.totalorder %s31, 1
    %p206 = por %p204, %p205
    %p208 = scmp.ne.s32.totalorder %s193, %s207
    %p209 = scmp.eq.s32.totalorder %s31, 0
    %p210 = por %p208, %p209
    %s212 = sadd.s32 %s211, 1
    %p215 = scmp.eq.s32.totalorder %s25, 1
    %p216 = scmp.ne.s32.totalorder %s211, %s213
    %p217 = scmp.eq.s32.totalorder %s25, 0
    %p218 = por %p216, %p217
    %p219 = scmp.ne.s32.totalorder %s211, %s213
    %p220 = scmp.eq.s32.totalorder %s30, 1
    %p221 = por %p219, %p220
    %p222 = scmp.ne.s32.totalorder %s213, %s214
    %p223 = scmp.eq.s32.totalorder %s30, 0
    %p224 = por %p222, %p223
    %p225 = scmp.ne.s32.totalorder %s213, %s214
    %p226 = scmp.eq.s32.totalorder %s31, 1
    %p227 = por %p225, %p226
    %p229 = scmp.ne.s32.totalorder %s214, %s228
    %p230 = scmp.eq.s32.totalorder %s31, 0
    %p231 = por %p229, %p230
    %s233 = sadd.s32 %s232, 1
    %p236 = scmp.eq.s32.totalorder %s25, 1
    %p237 = scmp.ne.s32.totalorder %s232, %s234
    %p238 = scmp.eq.s32.totalorder %s25, 0
    %p239 = por %p237, %p238
    %p240 = scmp.ne.s32.totalorder %s232, %s234
    %p241 = scmp.eq.s32.totalorder %s30, 1
    %p242 = por %p240, %p241
    %p243 = scmp.ne.s32.totalorder %s234, %s235
    %p244 = scmp.eq.s32.totalorder %s30, 0
    %p245 = por %p243, %p244
    %p246 = scmp.ne.s32.totalorder %s234, %s235
    %p247 = scmp.eq.s32.totalorder %s31, 1
    %p248 = por %p246, %p247
    %p250 = scmp.ne.s32.totalorder %s235, %s249
    %p251 = scmp.eq.s32.totalorder %s31, 0
    %p252 = por %p250, %p251
    %s254 = sadd.s32 %s253, 1
    %p257 = scmp.eq.s32.totalorder %s25, 1
    %p258 = scmp.ne.s32.totalorder %s253, %s255
    %p259 = scmp.eq.s32.totalorder %s25, 0
    %p260 = por %p258, %p259
    %p261 = scmp.ne.s32.totalorder %s253, %s255
    %p262 = scmp.eq.s32.totalorder %s30, 1
    %p263 = por %p261, %p262
    %p264 = scmp.ne.s32.totalorder %s255, %s256
    %p265 = scmp.eq.s32.totalorder %s30, 0
    %p266 = por %p264, %p265
    %p267 = scmp.ne.s32.totalorder %s255, %s256
    %p268 = scmp.eq.s32.totalorder %s31, 1
    %p269 = por %p267, %p268
    %p271 = scmp.ne.s32.totalorder %s256, %s270
    %p272 = scmp.eq.s32.totalorder %s31, 0
    %p273 = por %p271, %p272
    %s275 = sadd.s32 %s274, 1
    %p278 = scmp.eq.s32.totalorder %s25, 1
    %p279 = scmp.ne.s32.totalorder %s274, %s276
    %p280 = scmp.eq.s32.totalorder %s25, 0
    %p281 = por %p279, %p280
    %p282 = scmp.ne.s32.totalorder %s274, %s276
    %p283 = scmp.eq.s32.totalorder %s30, 1
    %p284 = por %p282, %p283
    %p285 = scmp.ne.s32.totalorder %s276, %s277
    %p286 = scmp.eq.s32.totalorder %s30, 0
    %p287 = por %p285, %p286
    %p288 = scmp.ne.s32.totalorder %s276, %s277
    %p289 = scmp.eq.s32.totalorder %s31, 1
    %p290 = por %p288, %p289
    %p292 = scmp.ne.s32.totalorder %s277, %s291
    %p293 = scmp.eq.s32.totalorder %s31, 0
    %p294 = por %p292, %p293
    %s295 = ssub.s32 %s25, %s32
    %p296 = scmp.eq.s32.totalorder %s295, 0
    %s298 = sadd.s32 %s297, 1
    %s299 = scalar_select %p296, %s297, %s298
    %p302 = pneg %p296
    %p303 = scmp.eq.s32.totalorder %s25, 1
    %p304 = por %p302, %p303
    %p305 = scmp.ne.s32.totalorder %s297, %s300
    %p306 = scmp.eq.s32.totalorder %s25, 0
    %p307 = por %p305, %p306
    %p308 = scmp.ne.s32.totalorder %s297, %s300
    %p309 = scmp.eq.s32.totalorder %s30, 1
    %p310 = por %p308, %p309
    %p311 = scmp.ne.s32.totalorder %s300, %s301
    %p312 = scmp.eq.s32.totalorder %s30, 0
    %p313 = por %p311, %p312
    %p314 = scmp.ne.s32.totalorder %s300, %s301
    %p315 = scmp.eq.s32.totalorder %s31, 1
    %p316 = por %p314, %p315
    %p318 = scmp.ne.s32.totalorder %s301, %s317
    %p319 = scmp.eq.s32.totalorder %s31, 0
    %p320 = por %p318, %p319
    %p321 = scmp.le.s32.totalorder 1, %s25
    %p322 = scmp.lt.s32.totalorder %s25, 3
    %p323 = pnand %p321, %p322
    %p324 = pneg %p323
    // Predicated region
    $region9: #{tpu_custom_call.1} parent=5 // pred_check
      _
    $region10: #{tpu_custom_call.1} parent=5 // pred_check_branch
      %326 = sbr.rel (%p323) target = $region12
    $region11: #{tpu_custom_call.1} parent=5 // pred_region
      %s327 = ssub.s32 %s25, 1
      // Predicated region
      $region13: #{tpu_custom_call.1} parent=11 // pred_check
        %p328 = pneg %p98
      $region14: #{tpu_custom_call.1} parent=11 // pred_check_branch
        %330 = sbr.rel (%p328) target = $region16
      $region15: #{tpu_custom_call.1} parent=11 // pred_region
        _
      $region16: #{tpu_custom_call.1} parent=11 // pred_fallthru
        _
      // Predicated region
      $region17: #{tpu_custom_call.1} parent=11 // pred_check
        %p331 = pneg %p119
      $region18: #{tpu_custom_call.1} parent=11 // pred_check_branch
        %333 = sbr.rel (%p331) target = $region20
      $region19: #{tpu_custom_call.1} parent=11 // pred_region
        _
      $region20: #{tpu_custom_call.1} parent=11 // pred_fallthru
        _
      // Predicated region
      $region21: #{tpu_custom_call.1} parent=11 // pred_check
        %p334 = pneg %p140
      $region22: #{tpu_custom_call.1} parent=11 // pred_check_branch
        %336 = sbr.rel (%p334) target = $region24
      $region23: #{tpu_custom_call.1} parent=11 // pred_region
        _
      $region24: #{tpu_custom_call.1} parent=11 // pred_fallthru
        _
      // Predicated region
      $region25: #{tpu_custom_call.1} parent=11 // pred_check
        %p337 = pneg %p161
      $region26: #{tpu_custom_call.1} parent=11 // pred_check_branch
        %339 = sbr.rel (%p337) target = $region28
      $region27: #{tpu_custom_call.1} parent=11 // pred_region
        _
      $region28: #{tpu_custom_call.1} parent=11 // pred_fallthru
        _
      // Predicated region
      $region29: #{tpu_custom_call.1} parent=11 // pred_check
        %p340 = pneg %p182
      $region30: #{tpu_custom_call.1} parent=11 // pred_check_branch
        %342 = sbr.rel (%p340) target = $region32
      $region31: #{tpu_custom_call.1} parent=11 // pred_region
        _
      $region32: #{tpu_custom_call.1} parent=11 // pred_fallthru
        _
      // Predicated region
      $region33: #{tpu_custom_call.1} parent=11 // pred_check
        %p343 = pneg %p203
      $region34: #{tpu_custom_call.1} parent=11 // pred_check_branch
        %345 = sbr.rel (%p343) target = $region36
      $region35: #{tpu_custom_call.1} parent=11 // pred_region
        _
      $region36: #{tpu_custom_call.1} parent=11 // pred_fallthru
        _
      // Predicated region
      $region37: #{tpu_custom_call.1} parent=11 // pred_check
        %p346 = pneg %p224
      $region38: #{tpu_custom_call.1} parent=11 // pred_check_branch
        %348 = sbr.rel (%p346) target = $region40
      $region39: #{tpu_custom_call.1} parent=11 // pred_region
        _
      $region40: #{tpu_custom_call.1} parent=11 // pred_fallthru
        _
      // Predicated region
      $region41: #{tpu_custom_call.1} parent=11 // pred_check
        %p349 = pneg %p245
      $region42: #{tpu_custom_call.1} parent=11 // pred_check_branch
        %351 = sbr.rel (%p349) target = $region44
      $region43: #{tpu_custom_call.1} parent=11 // pred_region
        _
      $region44: #{tpu_custom_call.1} parent=11 // pred_fallthru
        _
      // Predicated region
      $region45: #{tpu_custom_call.1} parent=11 // pred_check
        %p352 = pneg %p266
      $region46: #{tpu_custom_call.1} parent=11 // pred_check_branch
        %354 = sbr.rel (%p352) target = $region48
      $region47: #{tpu_custom_call.1} parent=11 // pred_region
        _
      $region48: #{tpu_custom_call.1} parent=11 // pred_fallthru
        _
      // Predicated region
      $region49: #{tpu_custom_call.1} parent=11 // pred_check
        %p355 = pneg %p287
      $region50: #{tpu_custom_call.1} parent=11 // pred_check_branch
        %357 = sbr.rel (%p355) target = $region52
      $region51: #{tpu_custom_call.1} parent=11 // pred_region
        _
      $region52: #{tpu_custom_call.1} parent=11 // pred_fallthru
        _
    $region12: #{tpu_custom_call.1} parent=5 // pred_fallthru
      _
    %p358 = scmp.lt.s32.totalorder %s25, 2
    // Predicated region
    $region53: #{tpu_custom_call.1} parent=5 // pred_check
      %p359 = pneg %p358
    $region54: #{tpu_custom_call.1} parent=5 // pred_check_branch
      %361 = sbr.rel (%p359) target = $region56
    $region55: #{tpu_custom_call.1} parent=5 // pred_region
      // Predicated region
      $region57: #{tpu_custom_call.1} parent=55 // pred_check
        %p362 = pneg %p45
      $region58: #{tpu_custom_call.1} parent=55 // pred_check_branch
        %364 = sbr.rel (%p362) target = $region60
      $region59: #{tpu_custom_call.1} parent=55 // pred_region
        %p365 = scmp.lt.s32.totalorder %s25, 1
        %s366 = scalar_select %p365, %s25, 1
        %s367 = smul.addr %s366, 2
        %s368 = smul.addr %s367, 8
        %s369 = scalar_lea.vmem %s1, %s368
      $region60: #{tpu_custom_call.1} parent=55 // pred_fallthru
        _
      // Predicated region
      $region61: #{tpu_custom_call.1} parent=55 // pred_check
        %p370 = pneg %p71
      $region62: #{tpu_custom_call.1} parent=55 // pred_check_branch
        %372 = sbr.rel (%p370) target = $region64
      $region63: #{tpu_custom_call.1} parent=55 // pred_region
        %p373 = scmp.lt.s32.totalorder %s25, 1
        %s374 = scalar_select %p373, %s25, 1
        %s375 = smul.addr %s374, 2
        %s376 = smul.addr %s375, 8
        %s377 = scalar_lea.vmem %s2, %s376
      $region64: #{tpu_custom_call.1} parent=55 // pred_fallthru
        _
    $region56: #{tpu_custom_call.1} parent=5 // pred_fallthru
      _
    %p378 = scmp.le.s32.totalorder 1, %s25
    %p379 = scmp.lt.s32.totalorder %s25, 3
    %p380 = pnand %p378, %p379
    %p381 = pneg %p380
    // Predicated region
    $region65: #{tpu_custom_call.1} parent=5 // pred_check
      _
    $region66: #{tpu_custom_call.1} parent=5 // pred_check_branch
      %383 = sbr.rel (%p380) target = $region68
    $region67: #{tpu_custom_call.1} parent=5 // pred_region
      %s384 = ssub.s32 %s25, 1
      %p385 = scmp.lt.s32.totalorder %s30, 1
      %s386 = scalar_select %p385, %s30, 1
      %s387 = smul.addr %s386, 2
      %s388 = smul.addr %s387, 8
      %s389 = scalar_lea.vmem %s1, %s388
      %p390 = pneg %p51
      %p391 = pneg %p48
      %p392 = scmp.lt.s32.totalorder %s30, 1
      %s393 = scalar_select %p392, %s30, 1
      %s394 = smul.addr %s393, 2
      %s395 = smul.addr %s394, 8
      %s396 = scalar_lea.vmem %s2, %s395
      %p397 = pneg %p77
      %p398 = pneg %p74
      %p399 = pneg %p98
      %p400 = pneg %p95
      %p401 = pneg %p119
      %p402 = pneg %p116
      %p403 = pneg %p140
      %p404 = pneg %p137
      %p405 = pneg %p161
      %p406 = pneg %p158
      %p407 = pneg %p182
      %p408 = pneg %p179
      %p409 = pneg %p203
      %p410 = pneg %p200
      %p411 = pneg %p224
      %p412 = pneg %p221
      %p413 = pneg %p245
      %p414 = pneg %p242
      %p415 = pneg %p266
      %p416 = pneg %p263
      %p417 = pneg %p287
      %p418 = pneg %p284
      %p419 = pneg %p313
      %p420 = pneg %p310
      %p421 = scmp.lt.s32.totalorder %s30, 1
      %s422 = scalar_select %p421, %s30, 1
      %s423 = smul.addr %s422, 2
      %s424 = smul.addr %s423, 8
      %s425 = scalar_lea.vmem %s13, %s424
      %p426 = scmp.lt.s32.totalorder %s30, 1
      %s427 = scalar_select %p426, %s30, 1
      %s428 = smul.addr %s427, 2
      %s429 = smul.addr %s428, 8
      %s430 = scalar_lea.vmem %s1, %s429
      %p431 = scmp.lt.s32.totalorder %s30, 1
      %s432 = scalar_select %p431, %s30, 1
      %s433 = smul.addr %s432, 2
      %s434 = smul.addr %s433, 8
      %s435 = scalar_lea.vmem %s2, %s434
      %p436 = scmp.lt.s32.totalorder %s30, 1
      %s437 = scalar_select %p436, %s30, 1
      %s438 = smul.addr %s437, 2
      %s439 = smul.addr %s438, 8
      %s440 = scalar_lea.vmem %s13, %s439
      %s442 = sld [smem:[#allocation4 + %s30]]
      %v443 = vlaneseq
      %v444 = vshrl.u32 %v443, 7
      %v445 = vadd.s32 %v444, 8
      %v446 = vstv %s442
      %vm447 = vcmp.lt.s32.totalorder %v444, %v446
      %vm448 = vcmp.lt.s32.totalorder %v445, %v446
      %v449 = vsel %vm447, 1, 0
      %v450 = vsel %vm448, 1, 0
      %v451 = vcvt.s32.f32 %v449
      %v452 = vcvt.s32.f32 %v450
      %v453 = vld [vmem:[%s430] sm:$0xff]
      %v454 = vld [vmem:[%s430 + $0x8] sm:$0xff]
      %v455 = vpack.c.bf16 %v454, %v453
      %v456 = vld [vmem:[%s3] sm:$0xf]
      %v457 = vld [vmem:[%s4] sm:$0x1]
      %v459 = vlaneseq
      %v460 = vshrl.u32 %v459, 7
      %v461 = vsub.s32 0, %v460
      %v462 = vrot.slane %v457, %v461
      %vm464 = vcmask 64512
      %v466 = vsel %vm464, %v455, 0
      %vm468 = vcmask 1043456
      %v470 = vsel %vm468, %v456, 0
      %472 = vmatprep.subr.bf16.mxu0 0
      %473 = vmatpush1.bf16.msra.mxu0 %v470
      %474 = vmatprep.subr.bf16.mxu0 0
      %475 = vmatpush1.bf16.msra.mxu0 0
      %476 = vmatprep.subr.bf16.mxu0 0
      %477 = vmatpush1.bf16.msra.mxu0 0
      %478 = vmatprep.subr.bf16.mxu0 0
      %479 = vmatpush1.bf16.msra.mxu0 0
      %480 = vmatprep.subr.bf16.mxu0 0
      %481 = vmatpush1.bf16.msra.mxu0 0
      %482 = vmatprep.subr.bf16.mxu0 0
      %483 = vmatpush1.bf16.msra.mxu0 0
      %484 = vmatprep.subr.bf16.mxu0 0
      %485 = vmatpush1.bf16.msra.mxu0 0
      %486 = vmatprep.subr.bf16.mxu0 0
      %487 = vmatpush1.bf16.msra.mxu0 0
      %488 = vmatprep.subr.bf16.mxu0 0
      %489 = vmatpush1.bf16.msra.mxu0 0
      %490 = vmatprep.subr.bf16.mxu0 0
      %491 = vmatpush1.bf16.msra.mxu0 0
      %492 = vmatprep.subr.bf16.mxu0 0
      %493 = vmatpush1.bf16.msra.mxu0 0
      %494 = vmatprep.subr.bf16.mxu0 0
      %495 = vmatpush1.bf16.msra.mxu0 0
      %496 = vmatprep.subr.bf16.mxu0 0
      %497 = vmatpush1.bf16.msra.mxu0 0
      %498 = vmatprep.subr.bf16.mxu0 0
      %499 = vmatpush1.bf16.msra.mxu0 0
      %500 = vmatprep.subr.bf16.mxu0 0
      %501 = vmatpush1.bf16.msra.mxu0 0
      %502 = vmatprep.subr.bf16.mxu0 0
      %503 = vmatpush1.bf16.msra.mxu0 0
      %504 = vmatprep.mubr.bf16.mxu0 0
      %505 = vmatmul.mubr.bf16.gmra.mrb[0].mxu0 %v466
      %v506 = vpop.f32.mrb[0].mxu0
      %v507 = vadd.f32 %v462, %v506
      %v508 = vpop.f32.mrb[0].mxu0
      %v509 = vpop.f32.mrb[0].mxu0
      %v510 = vadd.f32 %v462, %v509
      %v511 = vpop.f32.mrb[0].mxu0
      %512 = vdwg.mxu0
      %v513 = vmul.f32 %v507, %v451
      %v514 = vmul.f32 %v510, %v452
      %vm515 = vcmask 130048
      %516 = vst.msk [vmem:[#allocation2] sm:$0xff] %vm515, 0.0
      %517 = vst.msk [vmem:[#allocation2 + $0x8] sm:$0xff] %vm515, 0.0
      %518 = vst.msk [vmem:[#allocation2 + $0x10] sm:$0xff] %vm515, 0.0
      %519 = vst.msk [vmem:[#allocation2 + $0x18] sm:$0xff] %vm515, 0.0
      %520 = vst.msk [vmem:[#allocation2 + $0x8] sm:$0xff] %vm515, %v513
      %521 = vst.msk [vmem:[#allocation2 + $0x10] sm:$0xff] %vm515, %v514
      %v522 = vld [vmem:[#allocation2 + $0x6] sm:$0xff]
      %v523 = vld [vmem:[#allocation2 + $0xe] sm:$0xff]
      %v524 = vld [vmem:[#allocation2 + $0x7] sm:$0xff]
      %v525 = vld [vmem:[#allocation2 + $0xf] sm:$0xff]
      %v526 = vld [vmem:[#allocation2 + $0x8] sm:$0xff]
      %v527 = vld [vmem:[#allocation2 + $0x10] sm:$0xff]
      %v528 = vld [vmem:[#allocation2 + $0x9] sm:$0xff]
      %v529 = vld [vmem:[#allocation2 + $0x11] sm:$0xff]
      %v530 = vld [vmem:[#allocation2 + $0xa] sm:$0xff]
      %v531 = vld [vmem:[#allocation2 + $0x12] sm:$0xff]
      %534 = vrot.lane.b32.xlu0 %v524, 16
      %v535 = vpop.permute.xlu0 %534
      %536 = vrot.lane.b32.xlu0 %v525, 16
      %v537 = vpop.permute.xlu0 %536
      %542 = vrot.lane.b32.xlu0 %v526, 32
      %v543 = vpop.permute.xlu0 %542
      %544 = vrot.lane.b32.xlu0 %v527, 32
      %v545 = vpop.permute.xlu0 %544
      %550 = vrot.lane.b32.xlu0 %v528, 48
      %v551 = vpop.permute.xlu0 %550
      %552 = vrot.lane.b32.xlu0 %v529, 48
      %v553 = vpop.permute.xlu0 %552
      %558 = vrot.lane.b32.xlu0 %v530, 64
      %v559 = vpop.permute.xlu0 %558
      %560 = vrot.lane.b32.xlu0 %v531, 64
      %v561 = vpop.permute.xlu0 %560
      %v564 = vsel %vm515, %v522, %v535
      %v565 = vsel %vm515, %v523, %v537
      %vm566 = vcmask 261120
      %v567 = vsel %vm566, %v564, %v543
      %v568 = vsel %vm566, %v565, %v545
      %vm569 = vcmask 392192
      %v570 = vsel %vm569, %v567, %v551
      %v571 = vsel %vm569, %v568, %v553
      %vm572 = vcmask 523264
      %v573 = vsel %vm572, %v570, %v559
      %v574 = vsel %vm572, %v571, %v561
      %v575 = vpack.c.bf16 %v574, %v573
      %v576 = vld [vmem:[%s5] sm:$0xf]
      %v577 = vld [vmem:[%s5 + $0x4] sm:$0xf]
      %v578 = vld [vmem:[%s5 + $0x8] sm:$0xf]
      %v579 = vld [vmem:[%s5 + $0xc] sm:$0xf]
      %v580 = vld [vmem:[%s5 + $0x10] sm:$0xf]
      %v581 = vld [vmem:[%s5 + $0x14] sm:$0xf]
      %v582 = vld [vmem:[%s5 + $0x18] sm:$0xf]
      %v583 = vld [vmem:[%s5 + $0x1c] sm:$0xf]
      %v584 = vld [vmem:[%s5 + $0x20] sm:$0xf]
      %v585 = vld [vmem:[%s5 + $0x24] sm:$0xf]
      %v586 = vld [vmem:[%s6] sm:$0x1]
      %v588 = vlaneseq
      %v589 = vshrl.u32 %v588, 7
      %v590 = vsub.s32 0, %v589
      %v591 = vrot.slane %v586, %v590
      %v603 = vunpack.c.l.b16 %v576
      %v604 = vunpack.c.l.b16 %v577
      %v605 = vunpack.c.l.b16 %v578
      %v606 = vunpack.c.l.b16 %v579
      %v607 = vunpack.c.l.b16 %v580
      %v608 = vunpack.c.l.b16 %v581
      %v609 = vunpack.c.l.b16 %v582
      %v610 = vunpack.c.l.b16 %v583
      %v611 = vunpack.c.l.b16 %v584
      %v612 = vunpack.c.l.b16 %v585
      %v613 = vpack.c.b16 %v604, %v603
      %v614 = vpack.c.b16 %v606, %v605
      %v615 = vpack.c.b16 %v608, %v607
      %v616 = vpack.c.b16 %v610, %v609
      %v617 = vpack.c.b16 %v612, %v611
      %vm623 = vcmask 654336
      %v625 = vsel %vm623, %v575, 0
      %627 = vmatprep.subr.bf16.mxu0 0
      %628 = vmatpush1.bf16.msra.mxu0 %v613
      %629 = vmatprep.subr.bf16.mxu0 0
      %630 = vmatpush1.bf16.msra.mxu0 %v614
      %631 = vmatprep.subr.bf16.mxu0 0
      %632 = vmatpush1.bf16.msra.mxu0 %v615
      %633 = vmatprep.subr.bf16.mxu0 0
      %634 = vmatpush1.bf16.msra.mxu0 %v616
      %635 = vmatprep.subr.bf16.mxu0 0
      %636 = vmatpush1.bf16.msra.mxu0 %v617
      %637 = vmatprep.subr.bf16.mxu0 0
      %638 = vmatpush1.bf16.msra.mxu0 0
      %639 = vmatprep.subr.bf16.mxu0 0
      %640 = vmatpush1.bf16.msra.mxu0 0
      %641 = vmatprep.subr.bf16.mxu0 0
      %642 = vmatpush1.bf16.msra.mxu0 0
      %643 = vmatprep.subr.bf16.mxu0 0
      %644 = vmatpush1.bf16.msra.mxu0 0
      %645 = vmatprep.subr.bf16.mxu0 0
      %646 = vmatpush1.bf16.msra.mxu0 0
      %647 = vmatprep.subr.bf16.mxu0 0
      %648 = vmatpush1.bf16.msra.mxu0 0
      %649 = vmatprep.subr.bf16.mxu0 0
      %650 = vmatpush1.bf16.msra.mxu0 0
      %651 = vmatprep.subr.bf16.mxu0 0
      %652 = vmatpush1.bf16.msra.mxu0 0
      %653 = vmatprep.subr.bf16.mxu0 0
      %654 = vmatpush1.bf16.msra.mxu0 0
      %655 = vmatprep.subr.bf16.mxu0 0
      %656 = vmatpush1.bf16.msra.mxu0 0
      %657 = vmatprep.subr.bf16.mxu0 0
      %658 = vmatpush1.bf16.msra.mxu0 0
      %659 = vmatprep.mubr.bf16.mxu0 0
      %660 = vmatmul.mubr.bf16.gmra.mrb[0].mxu0 %v625
      %v661 = vpop.f32.mrb[0].mxu0
      %v662 = vadd.f32 %v591, %v661
      %v663 = vpop.f32.mrb[0].mxu0
      %v664 = vpop.f32.mrb[0].mxu0
      %v665 = vadd.f32 %v591, %v664
      %v666 = vpop.f32.mrb[0].mxu0
      %667 = vdwg.mxu0
      %v668 = vtanh.pop %v662
      %v669 = vtanh.pop %v665
      %v670 = vxor.u32 %v662, 2147483648
      %v671 = vxor.u32 %v665, 2147483648
      %v672 = vmul.f32 %v670, 1.442695
      %v673 = vpow.pop %v672
      %v674 = vmul.f32 %v671, 1.442695
      %v675 = vpow.pop %v674
      %v676 = vadd.f32 %v673, 1.0
      %v677 = vadd.f32 %v675, 1.0
      %v678 = vrcp.pop %v676
      %v679 = vmul.f32 1.0, %v678
      %v680 = vrcp.pop %v677
      %v681 = vmul.f32 1.0, %v680
      %684 = vrot.lane.b32.xlu0 %v679, 112
      %v685 = vpop.permute.xlu0 %684
      %686 = vrot.lane.b32.xlu0 %v681, 112
      %v687 = vpop.permute.xlu0 %686
      %v690 = vmul.f32 %v668, %v685
      %v691 = vmul.f32 %v669, %v687
      %v692 = vpack.c.bf16 %v691, %v690
      %v693 = vld [vmem:[%s7] sm:$0xf]
      %v694 = vld [vmem:[%s7 + $0x4] sm:$0xf]
      %v695 = vld [vmem:[%s8] sm:$0x1]
      %v697 = vlaneseq
      %v698 = vshrl.u32 %v697, 7
      %v699 = vsub.s32 0, %v698
      %v700 = vrot.slane %v695, %v699
      %v704 = vunpack.c.l.b16 %v693
      %v705 = vunpack.c.l.b16 %v694
      %v706 = vpack.c.b16 %v705, %v704
      %v709 = vsel %vm515, %v692, 0
      %711 = vmatprep.subr.bf16.mxu0 0
      %712 = vmatpush1.bf16.msra.mxu0 %v706
      %713 = vmatprep.subr.bf16.mxu0 0
      %714 = vmatpush1.bf16.msra.mxu0 0
      %715 = vmatprep.subr.bf16.mxu0 0
      %716 = vmatpush1.bf16.msra.mxu0 0
      %717 = vmatprep.subr.bf16.mxu0 0
      %718 = vmatpush1.bf16.msra.mxu0 0
      %719 = vmatprep.subr.bf16.mxu0 0
      %720 = vmatpush1.bf16.msra.mxu0 0
      %721 = vmatprep.subr.bf16.mxu0 0
      %722 = vmatpush1.bf16.msra.mxu0 0
      %723 = vmatprep.subr.bf16.mxu0 0
      %724 = vmatpush1.bf16.msra.mxu0 0
      %725 = vmatprep.subr.bf16.mxu0 0
      %726 = vmatpush1.bf16.msra.mxu0 0
      %727 = vmatprep.subr.bf16.mxu0 0
      %728 = vmatpush1.bf16.msra.mxu0 0
      %729 = vmatprep.subr.bf16.mxu0 0
      %730 = vmatpush1.bf16.msra.mxu0 0
      %731 = vmatprep.subr.bf16.mxu0 0
      %732 = vmatpush1.bf16.msra.mxu0 0
      %733 = vmatprep.subr.bf16.mxu0 0
      %734 = vmatpush1.bf16.msra.mxu0 0
      %735 = vmatprep.subr.bf16.mxu0 0
      %736 = vmatpush1.bf16.msra.mxu0 0
      %737 = vmatprep.subr.bf16.mxu0 0
      %738 = vmatpush1.bf16.msra.mxu0 0
      %739 = vmatprep.subr.bf16.mxu0 0
      %740 = vmatpush1.bf16.msra.mxu0 0
      %741 = vmatprep.subr.bf16.mxu0 0
      %742 = vmatpush1.bf16.msra.mxu0 0
      %743 = vmatprep.mubr.bf16.mxu0 0
      %744 = vmatmul.mubr.bf16.gmra.mrb[0].mxu0 %v709
      %v745 = vpop.f32.mrb[0].mxu0
      %v746 = vadd.f32 %v700, %v745
      %v747 = vpop.f32.mrb[0].mxu0
      %v748 = vpop.f32.mrb[0].mxu0
      %v749 = vadd.f32 %v700, %v748
      %v750 = vpop.f32.mrb[0].mxu0
      %751 = vdwg.mxu0
      %v752 = vadd.f32 %v513, %v746
      %v753 = vadd.f32 %v514, %v749
      %v754 = vmul.f32 %v752, %v451
      %v755 = vmul.f32 %v753, %v452
      %756 = vst.msk [vmem:[#allocation2 + $0x8] sm:$0xff] %vm515, %v754
      %757 = vst.msk [vmem:[#allocation2 + $0x10] sm:$0xff] %vm515, %v755
      %v758 = vld [vmem:[#allocation2 + $0x4] sm:$0xff]
      %v759 = vld [vmem:[#allocation2 + $0xc] sm:$0xff]
      %v760 = vld [vmem:[#allocation2 + $0x6] sm:$0xff]
      %v761 = vld [vmem:[#allocation2 + $0xe] sm:$0xff]
      %v762 = vld [vmem:[#allocation2 + $0x8] sm:$0xff]
      %v763 = vld [vmem:[#allocation2 + $0x10] sm:$0xff]
      %v764 = vld [vmem:[#allocation2 + $0xa] sm:$0xff]
      %v765 = vld [vmem:[#allocation2 + $0x12] sm:$0xff]
      %v766 = vld [vmem:[#allocation2 + $0x14] sm:$0xff]
      %769 = vrot.lane.b32.xlu0 %v760, 16
      %v770 = vpop.permute.xlu0 %769
      %771 = vrot.lane.b32.xlu0 %v761, 16
      %v772 = vpop.permute.xlu0 %771
      %777 = vrot.lane.b32.xlu0 %v762, 32
      %v778 = vpop.permute.xlu0 %777
      %779 = vrot.lane.b32.xlu0 %v763, 32
      %v780 = vpop.permute.xlu0 %779
      %785 = vrot.lane.b32.xlu0 %v764, 48
      %v786 = vpop.permute.xlu0 %785
      %787 = vrot.lane.b32.xlu0 %v765, 48
      %v788 = vpop.permute.xlu0 %787
      %793 = vrot.lane.b32.xlu0 %v759, 64
      %v794 = vpop.permute.xlu0 %793
      %795 = vrot.lane.b32.xlu0 %v766, 64
      %v796 = vpop.permute.xlu0 %795
      %v799 = vsel %vm515, %v758, %v770
      %v800 = vsel %vm515, %v759, %v772
      %v801 = vsel %vm566, %v799, %v778
      %v802 = vsel %vm566, %v800, %v780
      %v803 = vsel %vm569, %v801, %v786
      %v804 = vsel %vm569, %v802, %v788
      %v805 = vsel %vm572, %v803, %v794
      %v806 = vsel %vm572, %v804, %v796
      %v807 = vpack.c.bf16 %v806, %v805
      %s808 = scalar_lea.vmem %s5, 40
      %v809 = vld [vmem:[%s808] sm:$0xf]
      %v810 = vld [vmem:[%s808 + $0x4] sm:$0xf]
      %v811 = vld [vmem:[%s808 + $0x8] sm:$0xf]
      %v812 = vld [vmem:[%s808 + $0xc] sm:$0xf]
      %v813 = vld [vmem:[%s808 + $0x10] sm:$0xf]
      %v814 = vld [vmem:[%s808 + $0x14] sm:$0xf]
      %v815 = vld [vmem:[%s808 + $0x18] sm:$0xf]
      %v816 = vld [vmem:[%s808 + $0x1c] sm:$0xf]
      %v817 = vld [vmem:[%s808 + $0x20] sm:$0xf]
      %v818 = vld [vmem:[%s808 + $0x24] sm:$0xf]
      %s819 = scalar_lea.vmem %s6, 1
      %v820 = vld [vmem:[%s819] sm:$0x1]
      %v822 = vlaneseq
      %v823 = vshrl.u32 %v822, 7
      %v824 = vsub.s32 0, %v823
      %v825 = vrot.slane %v820, %v824
      %v837 = vunpack.c.l.b16 %v809
      %v838 = vunpack.c.l.b16 %v810
      %v839 = vunpack.c.l.b16 %v811
      %v840 = vunpack.c.l.b16 %v812
      %v841 = vunpack.c.l.b16 %v813
      %v842 = vunpack.c.l.b16 %v814
      %v843 = vunpack.c.l.b16 %v815
      %v844 = vunpack.c.l.b16 %v816
      %v845 = vunpack.c.l.b16 %v817
      %v846 = vunpack.c.l.b16 %v818
      %v847 = vpack.c.b16 %v838, %v837
      %v848 = vpack.c.b16 %v840, %v839
      %v849 = vpack.c.b16 %v842, %v841
      %v850 = vpack.c.b16 %v844, %v843
      %v851 = vpack.c.b16 %v846, %v845
      %v858 = vsel %vm623, %v807, 0
      %860 = vmatprep.subr.bf16.mxu0 0
      %861 = vmatpush1.bf16.msra.mxu0 %v847
      %862 = vmatprep.subr.bf16.mxu0 0
      %863 = vmatpush1.bf16.msra.mxu0 %v848
      %864 = vmatprep.subr.bf16.mxu0 0
      %865 = vmatpush1.bf16.msra.mxu0 %v849
      %866 = vmatprep.subr.bf16.mxu0 0
      %867 = vmatpush1.bf16.msra.mxu0 %v850
      %868 = vmatprep.subr.bf16.mxu0 0
      %869 = vmatpush1.bf16.msra.mxu0 %v851
      %870 = vmatprep.subr.bf16.mxu0 0
      %871 = vmatpush1.bf16.msra.mxu0 0
      %872 = vmatprep.subr.bf16.mxu0 0
      %873 = vmatpush1.bf16.msra.mxu0 0
      %874 = vmatprep.subr.bf16.mxu0 0
      %875 = vmatpush1.bf16.msra.mxu0 0
      %876 = vmatprep.subr.bf16.mxu0 0
      %877 = vmatpush1.bf16.msra.mxu0 0
      %878 = vmatprep.subr.bf16.mxu0 0
      %879 = vmatpush1.bf16.msra.mxu0 0
      %880 = vmatprep.subr.bf16.mxu0 0
      %881 = vmatpush1.bf16.msra.mxu0 0
      %882 = vmatprep.subr.bf16.mxu0 0
      %883 = vmatpush1.bf16.msra.mxu0 0
      %884 = vmatprep.subr.bf16.mxu0 0
      %885 = vmatpush1.bf16.msra.mxu0 0
      %886 = vmatprep.subr.bf16.mxu0 0
      %887 = vmatpush1.bf16.msra.mxu0 0
      %888 = vmatprep.subr.bf16.mxu0 0
      %889 = vmatpush1.bf16.msra.mxu0 0
      %890 = vmatprep.subr.bf16.mxu0 0
      %891 = vmatpush1.bf16.msra.mxu0 0
      %892 = vmatprep.mubr.bf16.mxu0 0
      %893 = vmatmul.mubr.bf16.gmra.mrb[0].mxu0 %v858
      %v894 = vpop.f32.mrb[0].mxu0
      %v895 = vadd.f32 %v825, %v894
      %v896 = vpop.f32.mrb[0].mxu0
      %v897 = vpop.f32.mrb[0].mxu0
      %v898 = vadd.f32 %v825, %v897
      %v899 = vpop.f32.mrb[0].mxu0
      %900 = vdwg.mxu0
      %v901 = vtanh.pop %v895
      %v902 = vtanh.pop %v898
      %v903 = vxor.u32 %v895, 2147483648
      %v904 = vxor.u32 %v898, 2147483648
      %v905 = vmul.f32 %v903, 1.442695
      %v906 = vpow.pop %v905
      %v907 = vmul.f32 %v904, 1.442695
      %v908 = vpow.pop %v907
      %v909 = vadd.f32 %v906, 1.0
      %v910 = vadd.f32 %v908, 1.0
      %v911 = vrcp.pop %v909
      %v912 = vmul.f32 1.0, %v911
      %v913 = vrcp.pop %v910
      %v914 = vmul.f32 1.0, %v913
      %917 = vrot.lane.b32.xlu0 %v912, 112
      %v918 = vpop.permute.xlu0 %917
      %919 = vrot.lane.b32.xlu0 %v914, 112
      %v920 = vpop.permute.xlu0 %919
      %v923 = vmul.f32 %v901, %v918
      %v924 = vmul.f32 %v902, %v920
      %v925 = vpack.c.bf16 %v924, %v923
      %s926 = scalar_lea.vmem %s7, 8
      %v927 = vld [vmem:[%s926] sm:$0xf]
      %v928 = vld [vmem:[%s926 + $0x4] sm:$0xf]
      %s929 = scalar_lea.vmem %s8, 1
      %v930 = vld [vmem:[%s929] sm:$0x1]
      %v932 = vlaneseq
      %v933 = vshrl.u32 %v932, 7
      %v934 = vsub.s32 0, %v933
      %v935 = vrot.slane %v930, %v934
      %v939 = vunpack.c.l.b16 %v927
      %v940 = vunpack.c.l.b16 %v928
      %v941 = vpack.c.b16 %v940, %v939
      %v944 = vsel %vm515, %v925, 0
      %946 = vmatprep.subr.bf16.mxu0 0
      %947 = vmatpush1.bf16.msra.mxu0 %v941
      %948 = vmatprep.subr.bf16.mxu0 0
      %949 = vmatpush1.bf16.msra.mxu0 0
      %950 = vmatprep.subr.bf16.mxu0 0
      %951 = vmatpush1.bf16.msra.mxu0 0
      %952 = vmatprep.subr.bf16.mxu0 0
      %953 = vmatpush1.bf16.msra.mxu0 0
      %954 = vmatprep.subr.bf16.mxu0 0
      %955 = vmatpush1.bf16.msra.mxu0 0
      %956 = vmatprep.subr.bf16.mxu0 0
      %957 = vmatpush1.bf16.msra.mxu0 0
      %958 = vmatprep.subr.bf16.mxu0 0
      %959 = vmatpush1.bf16.msra.mxu0 0
      %960 = vmatprep.subr.bf16.mxu0 0
      %961 = vmatpush1.bf16.msra.mxu0 0
      %962 = vmatprep.subr.bf16.mxu0 0
      %963 = vmatpush1.bf16.msra.mxu0 0
      %964 = vmatprep.subr.bf16.mxu0 0
      %965 = vmatpush1.bf16.msra.mxu0 0
      %966 = vmatprep.subr.bf16.mxu0 0
      %967 = vmatpush1.bf16.msra.mxu0 0
      %968 = vmatprep.subr.bf16.mxu0 0
      %969 = vmatpush1.bf16.msra.mxu0 0
      %970 = vmatprep.subr.bf16.mxu0 0
      %971 = vmatpush1.bf16.msra.mxu0 0
      %972 = vmatprep.subr.bf16.mxu0 0
      %973 = vmatpush1.bf16.msra.mxu0 0
      %974 = vmatprep.subr.bf16.mxu0 0
      %975 = vmatpush1.bf16.msra.mxu0 0
      %976 = vmatprep.subr.bf16.mxu0 0
      %977 = vmatpush1.bf16.msra.mxu0 0
      %978 = vmatprep.mubr.bf16.mxu0 0
      %979 = vmatmul.mubr.bf16.gmra.mrb[0].mxu0 %v944
      %v980 = vpop.f32.mrb[0].mxu0
      %v981 = vadd.f32 %v935, %v980
      %v982 = vpop.f32.mrb[0].mxu0
      %v983 = vpop.f32.mrb[0].mxu0
      %v984 = vadd.f32 %v935, %v983
      %v985 = vpop.f32.mrb[0].mxu0
      %986 = vdwg.mxu0
      %v987 = vadd.f32 %v754, %v981
      %v988 = vadd.f32 %v755, %v984
      %v989 = vmul.f32 %v987, %v451
      %v990 = vmul.f32 %v988, %v452
      %v991 = vadd.f32 %v746, %v981
      %v992 = vadd.f32 %v749, %v984
      %993 = vst.msk [vmem:[#allocation2 + $0x8] sm:$0xff] %vm515, %v989
      %994 = vst.msk [vmem:[#allocation2 + $0x10] sm:$0xff] %vm515, %v990
      %v995 = vld [vmem:[#allocation2] sm:$0xff]
      %v996 = vld [vmem:[#allocation2 + $0x8] sm:$0xff]
      %v997 = vld [vmem:[#allocation2 + $0x4] sm:$0xff]
      %v998 = vld [vmem:[#allocation2 + $0xc] sm:$0xff]
      %v999 = vld [vmem:[#allocation2 + $0x10] sm:$0xff]
      %v1000 = vld [vmem:[#allocation2 + $0x14] sm:$0xff]
      %v1001 = vld [vmem:[#allocation2 + $0x18] sm:$0xff]
      %1004 = vrot.lane.b32.xlu0 %v997, 16
      %v1005 = vpop.permute.xlu0 %1004
      %1006 = vrot.lane.b32.xlu0 %v998, 16
      %v1007 = vpop.permute.xlu0 %1006
      %1012 = vrot.lane.b32.xlu0 %v996, 32
      %v1013 = vpop.permute.xlu0 %1012
      %1014 = vrot.lane.b32.xlu0 %v999, 32
      %v1015 = vpop.permute.xlu0 %1014
      %1019 = vrot.lane.b32.xlu0 %v998, 48
      %v1020 = vpop.permute.xlu0 %1019
      %1021 = vrot.lane.b32.xlu0 %v1000, 48
      %v1022 = vpop.permute.xlu0 %1021
      %1026 = vrot.lane.b32.xlu0 %v999, 64
      %v1027 = vpop.permute.xlu0 %1026
      %1028 = vrot.lane.b32.xlu0 %v1001, 64
      %v1029 = vpop.permute.xlu0 %1028
      %v1032 = vsel %vm515, %v995, %v1005
      %v1033 = vsel %vm515, %v996, %v1007
      %v1034 = vsel %vm566, %v1032, %v1013
      %v1035 = vsel %vm566, %v1033, %v1015
      %v1036 = vsel %vm569, %v1034, %v1020
      %v1037 = vsel %vm569, %v1035, %v1022
      %v1038 = vsel %vm572, %v1036, %v1027
      %v1039 = vsel %vm572, %v1037, %v1029
      %v1040 = vpack.c.bf16 %v1039, %v1038
      %s1041 = scalar_lea.vmem %s5, 80
      %v1042 = vld [vmem:[%s1041] sm:$0xf]
      %v1043 = vld [vmem:[%s1041 + $0x4] sm:$0xf]
      %v1044 = vld [vmem:[%s1041 + $0x8] sm:$0xf]
      %v1045 = vld [vmem:[%s1041 + $0xc] sm:$0xf]
      %v1046 = vld [vmem:[%s1041 + $0x10] sm:$0xf]
      %v1047 = vld [vmem:[%s1041 + $0x14] sm:$0xf]
      %v1048 = vld [vmem:[%s1041 + $0x18] sm:$0xf]
      %v1049 = vld [vmem:[%s1041 + $0x1c] sm:$0xf]
      %v1050 = vld [vmem:[%s1041 + $0x20] sm:$0xf]
      %v1051 = vld [vmem:[%s1041 + $0x24] sm:$0xf]
      %s1052 = scalar_lea.vmem %s6, 2
      %v1053 = vld [vmem:[%s1052] sm:$0x1]
      %v1055 = vlaneseq
      %v1056 = vshrl.u32 %v1055, 7
      %v1057 = vsub.s32 0, %v1056
      %v1058 = vrot.slane %v1053, %v1057
      %v1070 = vunpack.c.l.b16 %v1042
      %v1071 = vunpack.c.l.b16 %v1043
      %v1072 = vunpack.c.l.b16 %v1044
      %v1073 = vunpack.c.l.b16 %v1045
      %v1074 = vunpack.c.l.b16 %v1046
      %v1075 = vunpack.c.l.b16 %v1047
      %v1076 = vunpack.c.l.b16 %v1048
      %v1077 = vunpack.c.l.b16 %v1049
      %v1078 = vunpack.c.l.b16 %v1050
      %v1079 = vunpack.c.l.b16 %v1051
      %v1080 = vpack.c.b16 %v1071, %v1070
      %v1081 = vpack.c.b16 %v1073, %v1072
      %v1082 = vpack.c.b16 %v1075, %v1074
      %v1083 = vpack.c.b16 %v1077, %v1076
      %v1084 = vpack.c.b16 %v1079, %v1078
      %v1091 = vsel %vm623, %v1040, 0
      %1093 = vmatprep.subr.bf16.mxu0 0
      %1094 = vmatpush1.bf16.msra.mxu0 %v1080
      %1095 = vmatprep.subr.bf16.mxu0 0
      %1096 = vmatpush1.bf16.msra.mxu0 %v1081
      %1097 = vmatprep.subr.bf16.mxu0 0
      %1098 = vmatpush1.bf16.msra.mxu0 %v1082
      %1099 = vmatprep.subr.bf16.mxu0 0
      %1100 = vmatpush1.bf16.msra.mxu0 %v1083
      %1101 = vmatprep.subr.bf16.mxu0 0
      %1102 = vmatpush1.bf16.msra.mxu0 %v1084
      %1103 = vmatprep.subr.bf16.mxu0 0
      %1104 = vmatpush1.bf16.msra.mxu0 0
      %1105 = vmatprep.subr.bf16.mxu0 0
      %1106 = vmatpush1.bf16.msra.mxu0 0
      %1107 = vmatprep.subr.bf16.mxu0 0
      %1108 = vmatpush1.bf16.msra.mxu0 0
      %1109 = vmatprep.subr.bf16.mxu0 0
      %1110 = vmatpush1.bf16.msra.mxu0 0
      %1111 = vmatprep.subr.bf16.mxu0 0
      %1112 = vmatpush1.bf16.msra.mxu0 0
      %1113 = vmatprep.subr.bf16.mxu0 0
      %1114 = vmatpush1.bf16.msra.mxu0 0
      %1115 = vmatprep.subr.bf16.mxu0 0
      %1116 = vmatpush1.bf16.msra.mxu0 0
      %1117 = vmatprep.subr.bf16.mxu0 0
      %1118 = vmatpush1.bf16.msra.mxu0 0
      %1119 = vmatprep.subr.bf16.mxu0 0
      %1120 = vmatpush1.bf16.msra.mxu0 0
      %1121 = vmatprep.subr.bf16.mxu0 0
      %1122 = vmatpush1.bf16.msra.mxu0 0
      %1123 = vmatprep.subr.bf16.mxu0 0
      %1124 = vmatpush1.bf16.msra.mxu0 0
      %1125 = vmatprep.mubr.bf16.mxu0 0
      %1126 = vmatmul.mubr.bf16.gmra.mrb[0].mxu0 %v1091
      %v1127 = vpop.f32.mrb[0].mxu0
      %v1128 = vadd.f32 %v1058, %v1127
      %v1129 = vpop.f32.mrb[0].mxu0
      %v1130 = vpop.f32.mrb[0].mxu0
      %v1131 = vadd.f32 %v1058, %v1130
      %v1132 = vpop.f32.mrb[0].mxu0
      %1133 = vdwg.mxu0
      %v1134 = vtanh.pop %v1128
      %v1135 = vtanh.pop %v1131
      %v1136 = vxor.u32 %v1128, 2147483648
      %v1137 = vxor.u32 %v1131, 2147483648
      %v1138 = vmul.f32 %v1136, 1.442695
      %v1139 = vpow.pop %v1138
      %v1140 = vmul.f32 %v1137, 1.442695
      %v1141 = vpow.pop %v1140
      %v1142 = vadd.f32 %v1139, 1.0
      %v1143 = vadd.f32 %v1141, 1.0
      %v1144 = vrcp.pop %v1142
      %v1145 = vmul.f32 1.0, %v1144
      %v1146 = vrcp.pop %v1143
      %v1147 = vmul.f32 1.0, %v1146
      %1150 = vrot.lane.b32.xlu0 %v1145, 112
      %v1151 = vpop.permute.xlu0 %1150
      %1152 = vrot.lane.b32.xlu0 %v1147, 112
      %v1153 = vpop.permute.xlu0 %1152
      %v1156 = vmul.f32 %v1134, %v1151
      %v1157 = vmul.f32 %v1135, %v1153
      %v1158 = vpack.c.bf16 %v1157, %v1156
      %v1159 = vld [vmem:[%s9] sm:$0xf]
      %v1160 = vld [vmem:[%s9 + $0x4] sm:$0xf]
      %v1161 = vld [vmem:[%s10] sm:$0x1]
      %v1163 = vlaneseq
      %v1164 = vshrl.u32 %v1163, 7
      %v1165 = vsub.s32 0, %v1164
      %v1166 = vrot.slane %v1161, %v1165
      %v1170 = vunpack.c.l.b16 %v1159
      %v1171 = vunpack.c.l.b16 %v1160
      %v1172 = vpack.c.b16 %v1171, %v1170
      %v1175 = vsel %vm515, %v1158, 0
      %1177 = vmatprep.subr.bf16.mxu0 0
      %1178 = vmatpush1.bf16.msra.mxu0 %v1172
      %1179 = vmatprep.subr.bf16.mxu0 0
      %1180 = vmatpush1.bf16.msra.mxu0 0
      %1181 = vmatprep.subr.bf16.mxu0 0
      %1182 = vmatpush1.bf16.msra.mxu0 0
      %1183 = vmatprep.subr.bf16.mxu0 0
      %1184 = vmatpush1.bf16.msra.mxu0 0
      %1185 = vmatprep.subr.bf16.mxu0 0
      %1186 = vmatpush1.bf16.msra.mxu0 0
      %1187 = vmatprep.subr.bf16.mxu0 0
      %1188 = vmatpush1.bf16.msra.mxu0 0
      %1189 = vmatprep.subr.bf16.mxu0 0
      %1190 = vmatpush1.bf16.msra.mxu0 0
      %1191 = vmatprep.subr.bf16.mxu0 0
      %1192 = vmatpush1.bf16.msra.mxu0 0
      %1193 = vmatprep.subr.bf16.mxu0 0
      %1194 = vmatpush1.bf16.msra.mxu0 0
      %1195 = vmatprep.subr.bf16.mxu0 0
      %1196 = vmatpush1.bf16.msra.mxu0 0
      %1197 = vmatprep.subr.bf16.mxu0 0
      %1198 = vmatpush1.bf16.msra.mxu0 0
      %1199 = vmatprep.subr.bf16.mxu0 0
      %1200 = vmatpush1.bf16.msra.mxu0 0
      %1201 = vmatprep.subr.bf16.mxu0 0
      %1202 = vmatpush1.bf16.msra.mxu0 0
      %1203 = vmatprep.subr.bf16.mxu0 0
      %1204 = vmatpush1.bf16.msra.mxu0 0
      %1205 = vmatprep.subr.bf16.mxu0 0
      %1206 = vmatpush1.bf16.msra.mxu0 0
      %1207 = vmatprep.subr.bf16.mxu0 0
      %1208 = vmatpush1.bf16.msra.mxu0 0
      %1209 = vmatprep.mubr.bf16.mxu0 0
      %1210 = vmatmul.mubr.bf16.gmra.mrb[0].mxu0 %v1175
      %v1211 = vpop.f32.mrb[0].mxu0
      %v1212 = vadd.f32 %v1166, %v1211
      %v1213 = vpop.f32.mrb[0].mxu0
      %v1214 = vpop.f32.mrb[0].mxu0
      %v1215 = vadd.f32 %v1166, %v1214
      %v1216 = vpop.f32.mrb[0].mxu0
      %1217 = vdwg.mxu0
      %1220 = vrot.lane.b32.xlu0 %v1212, 16
      %v1221 = vpop.permute.xlu0 %1220
      %1222 = vrot.lane.b32.xlu0 %v1215, 16
      %v1223 = vpop.permute.xlu0 %1222
      %v1226 = vadd.f32 %v991, %v1221
      %v1227 = vadd.f32 %v992, %v1223
      %v1228 = vmul.f32 %v1226, %v451
      %v1229 = vmul.f32 %v1227, %v452
      %v1230 = vpack.c.bf16 %v1229, %v1228
      %v1231 = vld [vmem:[%s11] sm:$0xf]
      %v1232 = vld [vmem:[%s11 + $0x4] sm:$0xf]
      %v1233 = vld [vmem:[%s12] sm:$0x1]
      %v1235 = vlaneseq
      %v1236 = vshrl.u32 %v1235, 7
      %v1237 = vsub.s32 0, %v1236
      %v1238 = vrot.slane %v1233, %v1237
      %1241 = vrot.lane.b32.xlu0 %v1230, 112
      %v1242 = vpop.permute.xlu0 %1241
      %v1245 = vunpack.c.l.b16 %v1231
      %v1246 = vunpack.c.l.b16 %v1232
      %v1247 = vpack.c.b16 %v1246, %v1245
      %v1250 = vsel %vm515, %v1242, 0
      %1252 = vmatprep.subr.bf16.mxu0 0
      %1253 = vmatpush1.bf16.msra.mxu0 %v1247
      %1254 = vmatprep.subr.bf16.mxu0 0
      %1255 = vmatpush1.bf16.msra.mxu0 0
      %1256 = vmatprep.subr.bf16.mxu0 0
      %1257 = vmatpush1.bf16.msra.mxu0 0
      %1258 = vmatprep.subr.bf16.mxu0 0
      %1259 = vmatpush1.bf16.msra.mxu0 0
      %1260 = vmatprep.subr.bf16.mxu0 0
      %1261 = vmatpush1.bf16.msra.mxu0 0
      %1262 = vmatprep.subr.bf16.mxu0 0
      %1263 = vmatpush1.bf16.msra.mxu0 0
      %1264 = vmatprep.subr.bf16.mxu0 0
      %1265 = vmatpush1.bf16.msra.mxu0 0
      %1266 = vmatprep.subr.bf16.mxu0 0
      %1267 = vmatpush1.bf16.msra.mxu0 0
      %1268 = vmatprep.subr.bf16.mxu0 0
      %1269 = vmatpush1.bf16.msra.mxu0 0
      %1270 = vmatprep.subr.bf16.mxu0 0
      %1271 = vmatpush1.bf16.msra.mxu0 0
      %1272 = vmatprep.subr.bf16.mxu0 0
      %1273 = vmatpush1.bf16.msra.mxu0 0
      %1274 = vmatprep.subr.bf16.mxu0 0
      %1275 = vmatpush1.bf16.msra.mxu0 0
      %1276 = vmatprep.subr.bf16.mxu0 0
      %1277 = vmatpush1.bf16.msra.mxu0 0
      %1278 = vmatprep.subr.bf16.mxu0 0
      %1279 = vmatpush1.bf16.msra.mxu0 0
      %1280 = vmatprep.subr.bf16.mxu0 0
      %1281 = vmatpush1.bf16.msra.mxu0 0
      %1282 = vmatprep.subr.bf16.mxu0 0
      %1283 = vmatpush1.bf16.msra.mxu0 0
      %1284 = vmatprep.mubr.bf16.mxu0 0
      %1285 = vmatmul.mubr.bf16.gmra.mrb[0].mxu0 %v1250
      %v1286 = vpop.f32.mrb[0].mxu0
      %v1287 = vadd.f32 %v1238, %v1286
      %v1288 = vpop.f32.mrb[0].mxu0
      %v1289 = vpop.f32.mrb[0].mxu0
      %v1290 = vadd.f32 %v1238, %v1289
      %v1291 = vpop.f32.mrb[0].mxu0
      %1292 = vdwg.mxu0
      %v1293 = vmul.f32 %v1287, %v451
      %v1294 = vmul.f32 %v1290, %v452
      %v1295 = vld [vmem:[%s435] sm:$0xff]
      %v1296 = vld [vmem:[%s435 + $0x8] sm:$0xff]
      %v1297 = vmul.f32 %v1293, 1.442695
      %v1298 = vpow.pop %v1297
      %v1299 = vmul.f32 %v1294, 1.442695
      %v1300 = vpow.pop %v1299
      %1303 = vrot.lane.b32.xlu0 %v1298, 124
      %v1304 = vpop.permute.xlu0 %1303
      %1305 = vrot.lane.b32.xlu0 %v1300, 124
      %v1306 = vpop.permute.xlu0 %1305
      %v1309 = vmul.f32 %v1295, %v1304
      %v1310 = vmul.f32 %v1296, %v1306
      %v1311 = vadd.f32 %v1293, %v1309
      %v1312 = vadd.f32 %v1294, %v1310
      %v1313 = vmul.f32 %v1311, %v451
      %v1314 = vmul.f32 %v1312, %v452
      %1317 = vrot.lane.b32.xlu0 %v1293, 4
      %v1318 = vpop.permute.xlu0 %1317
      %1319 = vrot.lane.b32.xlu0 %v1294, 4
      %v1320 = vpop.permute.xlu0 %1319
      %vm1323 = vcmask 31744
      %v1324 = vsel %vm1323, %v1313, %v1318
      %v1325 = vsel %vm1323, %v1314, %v1320
      %vm1326 = vcmask 97280
      %1327 = vst.msk [vmem:[%s440] sm:$0xff] %vm1326, %v1324
      %1328 = vst.msk [vmem:[%s440 + $0x8] sm:$0xff] %vm1326, %v1325
      %p1329 = scmp.lt.s32.totalorder %s30, 1
      %s1330 = scalar_select %p1329, %s30, 1
      %s1331 = smul.addr %s1330, 2
      %s1332 = smul.addr %s1331, 8
      %s1333 = scalar_lea.vmem %s13, %s1332
      // Predicated region
      $region69: #{tpu_custom_call.1} parent=67 // pred_check
        %p1334 = pneg %p310
      $region70: #{tpu_custom_call.1} parent=67 // pred_check_branch
        %1336 = sbr.rel (%p1334) target = $region72
      $region71: #{tpu_custom_call.1} parent=67 // pred_region
        _
      $region72: #{tpu_custom_call.1} parent=67 // pred_fallthru
        _
    $region68: #{tpu_custom_call.1} parent=5 // pred_fallthru
      _
    %p1337 = scmp.le.s32.totalorder 2, %s25
    // Predicated region
    $region73: #{tpu_custom_call.1} parent=5 // pred_check
      %p1338 = pneg %p1337
    $region74: #{tpu_custom_call.1} parent=5 // pred_check_branch
      %1340 = sbr.rel (%p1338) target = $region76
    $region75: #{tpu_custom_call.1} parent=5 // pred_region
      %s1341 = ssub.s32 %s25, 2
      // Predicated region
      $region77: #{tpu_custom_call.1} parent=75 // pred_check
        %p1342 = pneg %p316
      $region78: #{tpu_custom_call.1} parent=75 // pred_check_branch
        %1344 = sbr.rel (%p1342) target = $region80
      $region79: #{tpu_custom_call.1} parent=75 // pred_region
        %p1345 = scmp.lt.s32.totalorder %s31, 1
        %s1346 = scalar_select %p1345, %s31, 1
        %s1347 = smul.addr %s1346, 2
        %s1348 = smul.addr %s1347, 8
        %s1349 = scalar_lea.vmem %s13, %s1348
      $region80: #{tpu_custom_call.1} parent=75 // pred_fallthru
        _
    $region76: #{tpu_custom_call.1} parent=5 // pred_fallthru
      _
  $region6: #{tpu_custom_call.1} parent=0 // loop_footer
    %s29 = sadd.s32 1, %s25
  $region7: #{tpu_custom_call.1} parent=0 // loop_footer_branch
    %24 = sbr.rel target = $region3
  $region8: #{tpu_custom_call.1} parent=0 // loop_exit
    _

</llo_original>
